<compile_context>
chip_gen: v7x
topology: tpu7x:2x2x1
jax: 0.10.0
libtpu: 0.0.40
codegen_flags: <defaults>
</compile_context>

<pallas_src>
import functools

import jax
import jax.numpy as jnp
from jax import lax
from jax.experimental import pallas as pl
from jax.experimental.pallas import tpu as pltpu


def _pick_row_tile(ho, target=16):
    """Largest divisor of `ho` that is <= target and sublane aligned (%8==0);
    otherwise fall back to the full height (block == full dim is always legal)."""
    for t in range(min(target, ho), 0, -1):
        if ho % t == 0 and t % 8 == 0:
            return t
    return ho


# ---------------------------------------------------------------------------
# Fused InvertedResidual kernel: one (batch, output-row-tile) step.
# Lane layout: every activation packs (spatial-W, channels) into the lane axis.
# ---------------------------------------------------------------------------

def _fused_ir_kernel(xp_ref, w1_ref, b1_ref, wdw_ref, b2_ref, w3_ref, b3_ref,
                     o_ref, *, K, stride, pad, H, TH, Wf, Cin, Cmid, Cout,
                     Wo, rows_in, apply_residual):
    """
    xp_ref  : (Hp, Wp*Cin)        spatially padded input, lane-dense
    w1_ref  : (Wp*Cin, Wp*Cmid)   block-diagonal expand weights (BN folded,
                                  pad-column blocks zeroed)
    wdw_ref : (K, K, Wf*Cmid)     depthwise weights tiled along W
    w3_ref  : (Wf*Cmid, Wo*Cout)  block-diagonal project weights (BN folded,
                                  includes the W-axis stride subsample)
    o_ref   : (TH, Wo*Cout)       lane-dense output row tile
    """
    r = pl.program_id(1)
    row0 = pl.multiple_of(r * (TH * stride), TH * stride)

    # ---- Stage 1: expand 1x1 conv + bias + ReLU (one matmul per tile) -------
    x_slab = xp_ref[pl.ds(row0, rows_in), :]              # (rows_in, Wp*Cin)
    y = jnp.dot(x_slab, w1_ref[...], preferred_element_type=jnp.float32)
    y = jnp.maximum(y + b1_ref[...], 0.0)                 # (rows_in, Wp*Cmid)
    # Pad columns are already zero (zeroed weight blocks / bias); only rows in
    # the spatial zero-padding still need masking (relu(b1) != 0 there).
    row_idx = row0 + lax.broadcasted_iota(jnp.int32, (rows_in, 1), 0)
    row_ok = (row_idx >= pad) & (row_idx < pad + H)
    h1 = jnp.where(row_ok, y, 0.0)

    # ---- Stage 2: depthwise KxK conv + bias + ReLU (lane-dense taps) --------
    # Computed at stride 1 along W (the stride subsample happens in Stage 3),
    # so every tap is a contiguous lane slice.
    acc = jnp.zeros((TH, Wf * Cmid), jnp.float32)
    row_span = (TH - 1) * stride + 1
    for dy in range(K):
        for dx in range(K):
            tap = lax.slice(h1, (dy, dx * Cmid),
                            (dy + row_span, (dx + Wf) * Cmid),
                            (stride, 1))
            acc = acc + tap * wdw_ref[dy, dx, :].reshape(1, Wf * Cmid)
    h2 = jnp.maximum(acc + b2_ref[...], 0.0)              # (TH, Wf*Cmid)

    # ---- Stage 3: project 1x1 conv + bias (+ residual), one matmul ----------
    out = jnp.dot(h2, w3_ref[...], preferred_element_type=jnp.float32)
    out = out + b3_ref[...]                               # (TH, Wo*Cout)
    if apply_residual:                                    # stride==1, Cin==Cout
        res = lax.slice(x_slab, (pad, pad * Cin),
                        (pad + TH, (pad + Wf) * Cin))     # (TH, W*Cin)
        out = out + res
    o_ref[...] = out.astype(o_ref.dtype)                  # one full-lane store


# ---------------------------------------------------------------------------
# InvertedResidual forward (Pallas wrapper)
# ---------------------------------------------------------------------------

def inverted_residual_pallas(x_nchw, params, kernel_size, stride, eps=1e-5,
                             row_tile=16):
    N, Cin, H, W = x_nchw.shape
    K = kernel_size
    pad = K // 2
    Cmid = params["w1"].shape[0]
    Cout = params["w3"].shape[0]
    apply_residual = (stride == 1 and Cin == Cout)
    Hp, Wp = H + 2 * pad, W + 2 * pad
    Ho = (H + 2 * pad - K) // stride + 1
    Wo = (W + 2 * pad - K) // stride + 1
    Wf = Wp - K + 1                 # stride-1 depthwise output width (== W)

    # NCHW -> NHWC, pad spatially, flatten (W, C) into the lane axis.
    # TODO(synk): if the surrounding network is NHWC these transposes vanish.
    x_nhwc = jnp.transpose(x_nchw, (0, 2, 3, 1))
    xp = jnp.pad(x_nhwc, ((0, 0), (pad, pad), (pad, pad), (0, 0)))
    xp_flat = xp.reshape(N, Hp, Wp * Cin).astype(jnp.float32)

    # Fold eval-mode BN into the conv weights (scale) and a single bias add.
    def fold_bn(gamma, beta, mean, var):
        s = gamma / jnp.sqrt(var + eps)
        return s, beta - mean * s

    s1, b1 = fold_bn(*params["bn1"])
    s2, b2 = fold_bn(*params["bn2"])
    s3, b3 = fold_bn(*params["bn3"])
    f32 = jnp.float32

    # Expand 1x1 as a block-diagonal matmul over the (W, C) lane layout.  The
    # diagonal blocks (and bias) at spatial-pad columns are zeroed, so the
    # expanded activation is already zero there.
    w1t = (params["w1"][:, :, 0, 0] * s1[:, None]).T.astype(f32)      # (Cin,Cmid)
    col = jnp.arange(Wp)
    valid_w = ((col >= pad) & (col < pad + W)).astype(f32)            # (Wp,)
    eye_w = jnp.eye(Wp, dtype=f32) * valid_w[None, :]
    w1_big = (eye_w[:, None, :, None] * w1t[None, :, None, :]
              ).reshape(Wp * Cin, Wp * Cmid)
    b1_t = (valid_w[:, None] * b1[None, :].astype(f32)).reshape(1, Wp * Cmid)

    # Depthwise weights tiled along W so each tap broadcasts over the lane axis.
    wdw_kkc = jnp.transpose(params["w_dw"][:, 0, :, :] * s2[:, None, None],
                            (1, 2, 0)).astype(f32)                    # (K,K,Cmid)
    wdw_t = jnp.tile(wdw_kkc, (1, 1, Wf))                             # (K,K,Wf*Cmid)
    b2_t = jnp.tile(b2.astype(f32), Wf).reshape(1, Wf * Cmid)

    # Project 1x1 as a block-diagonal matmul that also performs the W-axis
    # stride subsampling (the depthwise stage runs at stride 1 along W).
    w3t = (params["w3"][:, :, 0, 0] * s3[:, None]).T.astype(f32)      # (Cmid,Cout)
    sel = (jnp.arange(Wf)[:, None] == stride * jnp.arange(Wo)[None, :]
           ).astype(f32)                                              # (Wf, Wo)
    w3_big = (sel[:, None, :, None] * w3t[None, :, None, :]
              ).reshape(Wf * Cmid, Wo * Cout)
    b3_t = jnp.tile(b3.astype(f32), Wo).reshape(1, Wo * Cout)

    TH = _pick_row_tile(Ho, row_tile)
    RT = Ho // TH
    rows_in = (TH - 1) * stride + K

    kern = functools.partial(
        _fused_ir_kernel, K=K, stride=stride, pad=pad, H=H, TH=TH, Wf=Wf,
        Cin=Cin, Cmid=Cmid, Cout=Cout, Wo=Wo, rows_in=rows_in,
        apply_residual=apply_residual)

    # Explicit VMEM budget (double-buffered blocks + live values), capped at
    # 32 MiB to leave headroom on v7x's 64 MiB per-TC VMEM.
    itemsize = 4
    xp_blk = Hp * Wp * Cin * itemsize
    out_blk = TH * Wo * Cout * itemsize
    w_bytes = (Wp * Cin * Wp * Cmid + K * K * Wf * Cmid + Wf * Cmid * Wo * Cout
               + Wp * Cmid + Wf * Cmid + Wo * Cout) * itemsize
    live_bytes = (rows_in * Wp * (Cin + Cmid) + 3 * TH * Wf * Cmid
                  + TH * Wo * Cout) * itemsize
    vmem_est = 2 * (xp_blk + out_blk + w_bytes) + live_bytes
    vmem_limit = int(min(max(2 * vmem_est, 8 * 1024 * 1024),
                         32 * 1024 * 1024))

    cost = pl.CostEstimate(
        flops=2 * N * RT * (rows_in * (Wp * Cin) * (Wp * Cmid)
                            + TH * Wf * Cmid * K * K
                            + TH * (Wf * Cmid) * (Wo * Cout)),
        transcendentals=0,
        bytes_accessed=(N * Hp * Wp * Cin + N * Ho * Wo * Cout) * itemsize
                       + w_bytes)

    out_flat = pl.pallas_call(
        kern,
        out_shape=jax.ShapeDtypeStruct((N, Ho, Wo * Cout), x_nchw.dtype),
        grid=(N, RT),
        in_specs=[
            # Padded input: resident per batch (index map constant over r).
            pl.BlockSpec((None, Hp, Wp * Cin), lambda n, r: (n, 0, 0)),
            pl.BlockSpec((Wp * Cin, Wp * Cmid), lambda n, r: (0, 0)),
            pl.BlockSpec((1, Wp * Cmid), lambda n, r: (0, 0)),
            pl.BlockSpec((K, K, Wf * Cmid), lambda n, r: (0, 0, 0)),
            pl.BlockSpec((1, Wf * Cmid), lambda n, r: (0, 0)),
            pl.BlockSpec((Wf * Cmid, Wo * Cout), lambda n, r: (0, 0)),
            pl.BlockSpec((1, Wo * Cout), lambda n, r: (0, 0)),
        ],
        out_specs=pl.BlockSpec((None, TH, Wo * Cout), lambda n, r: (n, r, 0)),
        compiler_params=pltpu.CompilerParams(
            dimension_semantics=("parallel", "parallel"),
            vmem_limit_bytes=vmem_limit),
        cost_estimate=cost,
    )(xp_flat, w1_big, b1_t, wdw_t, b2_t, w3_big, b3_t)

    out_nhwc = out_flat.reshape(N, Ho, Wo, Cout)
    return jnp.transpose(out_nhwc, (0, 3, 1, 2))           # NHWC -> NCHW


# ---------------------------------------------------------------------------
# Pure-JAX reference (mirrors the PyTorch module, eval-mode BN)
# ---------------------------------------------------------------------------

def inverted_residual_reference(x, p, kernel_size, stride, eps=1e-5):
    def bn(y, gamma, beta, mean, var):
        return ((y - mean[None, :, None, None])
                / jnp.sqrt(var[None, :, None, None] + eps)
                * gamma[None, :, None, None] + beta[None, :, None, None])

    dn = ("NCHW", "OIHW", "NCHW")
    pad = kernel_size // 2
    y = lax.conv_general_dilated(x, p["w1"], (1, 1), "VALID",
                                 dimension_numbers=dn)
    y = jax.nn.relu(bn(y, *p["bn1"]))
    y = lax.conv_general_dilated(y, p["w_dw"], (stride, stride),
                                 [(pad, pad), (pad, pad)],
                                 dimension_numbers=dn,
                                 feature_group_count=p["w_dw"].shape[0])
    y = jax.nn.relu(bn(y, *p["bn2"]))
    y = lax.conv_general_dilated(y, p["w3"], (1, 1), "VALID",
                                 dimension_numbers=dn)
    y = bn(y, *p["bn3"])
    if stride == 1 and x.shape[1] == y.shape[1]:
        y = y + x
    return y


# ---------------------------------------------------------------------------
# Deterministic parameter construction (PyTorch __init__ shapes)
# ---------------------------------------------------------------------------

def make_params(key, in_channels, out_channels, kernel_size, expansion):
    channels = in_channels * expansion
    keys = jax.random.split(key, 6)

    def bn_params(k, c):
        k0, k1, k2, k3 = jax.random.split(k, 4)
        gamma = 1.0 + 0.1 * jax.random.normal(k0, (c,), jnp.float32)
        beta = 0.1 * jax.random.normal(k1, (c,), jnp.float32)
        mean = 0.1 * jax.random.normal(k2, (c,), jnp.float32)
        var = jnp.abs(jax.random.normal(k3, (c,), jnp.float32)) + 0.5
        return (gamma, beta, mean, var)

    return {
        # nn.Conv2d(in_channels, channels, 1, bias=False)
        "w1": 0.2 * jax.random.normal(
            keys[0], (channels, in_channels, 1, 1), jnp.float32),
        "bn1": bn_params(keys[1], channels),
        # nn.Conv2d(channels, channels, k, stride, pad, groups=channels)
        "w_dw": 0.2 * jax.random.normal(
            keys[2], (channels, 1, kernel_size, kernel_size), jnp.float32),
        "bn2": bn_params(keys[3], channels),
        # nn.Conv2d(channels, out_channels, 1, bias=False)
        "w3": 0.2 * jax.random.normal(
            keys[4], (out_channels, channels, 1, 1), jnp.float32),
        "bn3": bn_params(keys[5], out_channels),
    }


if __name__ == "__main__":
    in_channels, out_channels = 8, 8
    kernel_size, stride, expansion = 3, 1, 3     # residual path applies
    N, H, W = 2, 16, 16

    key = jax.random.PRNGKey(0)
    k_x, k_p = jax.random.split(key)
    x = jax.random.normal(k_x, (N, in_channels, H, W), jnp.float32)
    params = make_params(k_p, in_channels, out_channels, kernel_size, expansion)

    fwd = jax.jit(functools.partial(
        inverted_residual_pallas, kernel_size=kernel_size, stride=stride))
    out = jax.block_until_ready(fwd(x, params))

    ref = jax.block_until_ready(
        inverted_residual_reference(x, params, kernel_size, stride))

    assert out.shape == ref.shape, (out.shape, ref.shape)
    assert jnp.allclose(out, ref, atol=1e-4, rtol=1e-4), float(
        jnp.max(jnp.abs(out - ref)))
    print("KERNEL_OK")
</pallas_src>

<mosaic_0001>
module attributes {stable_mosaic.version = 11 : i64} {
  func.func @_fused_ir_kernel(%arg0: i32, %arg1: i32, %arg2: memref<1x18x144xf32, #tpu.memory_space<vmem>>, %arg3: memref<144x432xf32, #tpu.memory_space<vmem>>, %arg4: memref<1x432xf32, #tpu.memory_space<vmem>>, %arg5: memref<3x3x384xf32, #tpu.memory_space<vmem>>, %arg6: memref<1x384xf32, #tpu.memory_space<vmem>>, %arg7: memref<384x128xf32, #tpu.memory_space<vmem>>, %arg8: memref<1x128xf32, #tpu.memory_space<vmem>>, %arg9: memref<1x16x128xf32, #tpu.memory_space<vmem>>) attributes {dimension_semantics = [#tpu.dimension_semantics<parallel>, #tpu.dimension_semantics<parallel>], iteration_bounds = array<i64: 2, 1>, scalar_prefetch = 0 : i64, scratch_operands = 0 : i64, tpu.core_type = #tpu.core_type<tc>, window_params = [{transform_indices = @transform_0, window_bounds = array<i64: 1, 18, 144>}, {pipeline_mode = #tpu.pipeline_mode<synchronous>, transform_indices = @transform_1, window_bounds = array<i64: 144, 432>}, {pipeline_mode = #tpu.pipeline_mode<synchronous>, transform_indices = @transform_2, window_bounds = array<i64: 1, 432>}, {pipeline_mode = #tpu.pipeline_mode<synchronous>, transform_indices = @transform_3, window_bounds = array<i64: 3, 3, 384>}, {pipeline_mode = #tpu.pipeline_mode<synchronous>, transform_indices = @transform_4, window_bounds = array<i64: 1, 384>}, {pipeline_mode = #tpu.pipeline_mode<synchronous>, transform_indices = @transform_5, window_bounds = array<i64: 384, 128>}, {pipeline_mode = #tpu.pipeline_mode<synchronous>, transform_indices = @transform_6, window_bounds = array<i64: 1, 128>}, {transform_indices = @transform_7, window_bounds = array<i64: 1, 16, 128>}]} {
    %c16_i32 = arith.constant 16 : i32
    %0 = arith.muli %arg1, %c16_i32 : i32
    %1 = tpu.assume_multiple %0, 16 : i32
    %c0 = arith.constant 0 : index
    %2 = arith.index_cast %1 : i32 to index
    %c0_0 = arith.constant 0 : index
    %3 = vector.load %arg2[%c0, %2, %c0_0] : memref<1x18x144xf32, #tpu.memory_space<vmem>>, vector<1x18x144xf32>
    %4 = vector.shape_cast %3 : vector<1x18x144xf32> to vector<18x144xf32>
    %c0_1 = arith.constant 0 : index
    %c0_2 = arith.constant 0 : index
    %5 = vector.load %arg3[%c0_1, %c0_2] : memref<144x432xf32, #tpu.memory_space<vmem>>, vector<144x432xf32>
    %cst = arith.constant dense<0.000000e+00> : vector<18x432xf32>
    %6 = tpu.matmul %4, %5, %cst {dimension_numbers = #tpu.dot_dimension_numbers<[1], [0], [0], [1], [0, 0, 1, 1], [], []>} : vector<18x144xf32>, vector<144x432xf32>, vector<18x432xf32> -> vector<18x432xf32>
    %c0_3 = arith.constant 0 : index
    %c0_4 = arith.constant 0 : index
    %7 = vector.load %arg4[%c0_3, %c0_4] : memref<1x432xf32, #tpu.memory_space<vmem>>, vector<1x432xf32>
    %8 = vector.broadcast %7 : vector<1x432xf32> to vector<18x432xf32>
    %9 = arith.addf %6, %8 : vector<18x432xf32>
    %cst_5 = arith.constant 0.000000e+00 : f32
    %10 = vector.broadcast %cst_5 : f32 to vector<18x432xf32>
    %11 = arith.maximumf %9, %10 : vector<18x432xf32>
    %12 = tpu.iota {dimensions = array<i32: 0>} : vector<18x1xi32>
    %13 = vector.broadcast %1 : i32 to vector<18x1xi32>
    %14 = arith.addi %13, %12 : vector<18x1xi32>
    %c1_i32 = arith.constant 1 : i32
    %15 = vector.broadcast %c1_i32 : i32 to vector<18x1xi32>
    %16 = arith.cmpi sge, %14, %15 : vector<18x1xi32>
    %c17_i32 = arith.constant 17 : i32
    %17 = vector.broadcast %c17_i32 : i32 to vector<18x1xi32>
    %18 = arith.cmpi slt, %14, %17 : vector<18x1xi32>
    %19 = arith.andi %16, %18 : vector<18x1xi1>
    %cst_6 = arith.constant 0.000000e+00 : f32
    %20 = vector.shape_cast %19 : vector<18x1xi1> to vector<18x1xi1>
    %21 = vector.broadcast %20 : vector<18x1xi1> to vector<18x432xi1>
    %22 = vector.broadcast %cst_6 : f32 to vector<18x432xf32>
    %23 = arith.select %21, %11, %22 : vector<18x432xi1>, vector<18x432xf32>
    %cst_7 = arith.constant 0.000000e+00 : f32
    %24 = vector.broadcast %cst_7 : f32 to vector<16x384xf32>
    %25 = vector.extract_strided_slice %23 {offsets = [0, 0], sizes = [16, 384], strides = [1, 1]} : vector<18x432xf32> to vector<16x384xf32>
    %c0_8 = arith.constant 0 : index
    %c0_9 = arith.constant 0 : index
    %c0_10 = arith.constant 0 : index
    %26 = vector.load %arg5[%c0_8, %c0_9, %c0_10] : memref<3x3x384xf32, #tpu.memory_space<vmem>>, vector<1x1x384xf32>
    %27 = vector.shape_cast %26 : vector<1x1x384xf32> to vector<384xf32>
    %28 = vector.shape_cast %27 : vector<384xf32> to vector<1x384xf32>
    %29 = vector.broadcast %28 : vector<1x384xf32> to vector<16x384xf32>
    %30 = arith.mulf %25, %29 : vector<16x384xf32>
    %31 = arith.addf %24, %30 : vector<16x384xf32>
    %32 = vector.extract_strided_slice %23 {offsets = [0, 24], sizes = [16, 384], strides = [1, 1]} : vector<18x432xf32> to vector<16x384xf32>
    %c0_11 = arith.constant 0 : index
    %c1 = arith.constant 1 : index
    %c0_12 = arith.constant 0 : index
    %33 = vector.load %arg5[%c0_11, %c1, %c0_12] : memref<3x3x384xf32, #tpu.memory_space<vmem>>, vector<1x1x384xf32>
    %34 = vector.shape_cast %33 : vector<1x1x384xf32> to vector<384xf32>
    %35 = vector.shape_cast %34 : vector<384xf32> to vector<1x384xf32>
    %36 = vector.broadcast %35 : vector<1x384xf32> to vector<16x384xf32>
    %37 = arith.mulf %32, %36 : vector<16x384xf32>
    %38 = arith.addf %31, %37 : vector<16x384xf32>
    %39 = vector.extract_strided_slice %23 {offsets = [0, 48], sizes = [16, 384], strides = [1, 1]} : vector<18x432xf32> to vector<16x384xf32>
    %c0_13 = arith.constant 0 : index
    %c2 = arith.constant 2 : index
    %c0_14 = arith.constant 0 : index
    %40 = vector.load %arg5[%c0_13, %c2, %c0_14] : memref<3x3x384xf32, #tpu.memory_space<vmem>>, vector<1x1x384xf32>
    %41 = vector.shape_cast %40 : vector<1x1x384xf32> to vector<384xf32>
    %42 = vector.shape_cast %41 : vector<384xf32> to vector<1x384xf32>
    %43 = vector.broadcast %42 : vector<1x384xf32> to vector<16x384xf32>
    %44 = arith.mulf %39, %43 : vector<16x384xf32>
    %45 = arith.addf %38, %44 : vector<16x384xf32>
    %46 = vector.extract_strided_slice %23 {offsets = [1, 0], sizes = [16, 384], strides = [1, 1]} : vector<18x432xf32> to vector<16x384xf32>
    %c1_15 = arith.constant 1 : index
    %c0_16 = arith.constant 0 : index
    %c0_17 = arith.constant 0 : index
    %47 = vector.load %arg5[%c1_15, %c0_16, %c0_17] : memref<3x3x384xf32, #tpu.memory_space<vmem>>, vector<1x1x384xf32>
    %48 = vector.shape_cast %47 : vector<1x1x384xf32> to vector<384xf32>
    %49 = vector.shape_cast %48 : vector<384xf32> to vector<1x384xf32>
    %50 = vector.broadcast %49 : vector<1x384xf32> to vector<16x384xf32>
    %51 = arith.mulf %46, %50 : vector<16x384xf32>
    %52 = arith.addf %45, %51 : vector<16x384xf32>
    %53 = vector.extract_strided_slice %23 {offsets = [1, 24], sizes = [16, 384], strides = [1, 1]} : vector<18x432xf32> to vector<16x384xf32>
    %c1_18 = arith.constant 1 : index
    %c1_19 = arith.constant 1 : index
    %c0_20 = arith.constant 0 : index
    %54 = vector.load %arg5[%c1_18, %c1_19, %c0_20] : memref<3x3x384xf32, #tpu.memory_space<vmem>>, vector<1x1x384xf32>
    %55 = vector.shape_cast %54 : vector<1x1x384xf32> to vector<384xf32>
    %56 = vector.shape_cast %55 : vector<384xf32> to vector<1x384xf32>
    %57 = vector.broadcast %56 : vector<1x384xf32> to vector<16x384xf32>
    %58 = arith.mulf %53, %57 : vector<16x384xf32>
    %59 = arith.addf %52, %58 : vector<16x384xf32>
    %60 = vector.extract_strided_slice %23 {offsets = [1, 48], sizes = [16, 384], strides = [1, 1]} : vector<18x432xf32> to vector<16x384xf32>
    %c1_21 = arith.constant 1 : index
    %c2_22 = arith.constant 2 : index
    %c0_23 = arith.constant 0 : index
    %61 = vector.load %arg5[%c1_21, %c2_22, %c0_23] : memref<3x3x384xf32, #tpu.memory_space<vmem>>, vector<1x1x384xf32>
    %62 = vector.shape_cast %61 : vector<1x1x384xf32> to vector<384xf32>
    %63 = vector.shape_cast %62 : vector<384xf32> to vector<1x384xf32>
    %64 = vector.broadcast %63 : vector<1x384xf32> to vector<16x384xf32>
    %65 = arith.mulf %60, %64 : vector<16x384xf32>
    %66 = arith.addf %59, %65 : vector<16x384xf32>
    %67 = vector.extract_strided_slice %23 {offsets = [2, 0], sizes = [16, 384], strides = [1, 1]} : vector<18x432xf32> to vector<16x384xf32>
    %c2_24 = arith.constant 2 : index
    %c0_25 = arith.constant 0 : index
    %c0_26 = arith.constant 0 : index
    %68 = vector.load %arg5[%c2_24, %c0_25, %c0_26] : memref<3x3x384xf32, #tpu.memory_space<vmem>>, vector<1x1x384xf32>
    %69 = vector.shape_cast %68 : vector<1x1x384xf32> to vector<384xf32>
    %70 = vector.shape_cast %69 : vector<384xf32> to vector<1x384xf32>
    %71 = vector.broadcast %70 : vector<1x384xf32> to vector<16x384xf32>
    %72 = arith.mulf %67, %71 : vector<16x384xf32>
    %73 = arith.addf %66, %72 : vector<16x384xf32>
    %74 = vector.extract_strided_slice %23 {offsets = [2, 24], sizes = [16, 384], strides = [1, 1]} : vector<18x432xf32> to vector<16x384xf32>
    %c2_27 = arith.constant 2 : index
    %c1_28 = arith.constant 1 : index
    %c0_29 = arith.constant 0 : index
    %75 = vector.load %arg5[%c2_27, %c1_28, %c0_29] : memref<3x3x384xf32, #tpu.memory_space<vmem>>, vector<1x1x384xf32>
    %76 = vector.shape_cast %75 : vector<1x1x384xf32> to vector<384xf32>
    %77 = vector.shape_cast %76 : vector<384xf32> to vector<1x384xf32>
    %78 = vector.broadcast %77 : vector<1x384xf32> to vector<16x384xf32>
    %79 = arith.mulf %74, %78 : vector<16x384xf32>
    %80 = arith.addf %73, %79 : vector<16x384xf32>
    %81 = vector.extract_strided_slice %23 {offsets = [2, 48], sizes = [16, 384], strides = [1, 1]} : vector<18x432xf32> to vector<16x384xf32>
    %c2_30 = arith.constant 2 : index
    %c2_31 = arith.constant 2 : index
    %c0_32 = arith.constant 0 : index
    %82 = vector.load %arg5[%c2_30, %c2_31, %c0_32] : memref<3x3x384xf32, #tpu.memory_space<vmem>>, vector<1x1x384xf32>
    %83 = vector.shape_cast %82 : vector<1x1x384xf32> to vector<384xf32>
    %84 = vector.shape_cast %83 : vector<384xf32> to vector<1x384xf32>
    %85 = vector.broadcast %84 : vector<1x384xf32> to vector<16x384xf32>
    %86 = arith.mulf %81, %85 : vector<16x384xf32>
    %87 = arith.addf %80, %86 : vector<16x384xf32>
    %c0_33 = arith.constant 0 : index
    %c0_34 = arith.constant 0 : index
    %88 = vector.load %arg6[%c0_33, %c0_34] : memref<1x384xf32, #tpu.memory_space<vmem>>, vector<1x384xf32>
    %89 = vector.broadcast %88 : vector<1x384xf32> to vector<16x384xf32>
    %90 = arith.addf %87, %89 : vector<16x384xf32>
    %cst_35 = arith.constant 0.000000e+00 : f32
    %91 = vector.broadcast %cst_35 : f32 to vector<16x384xf32>
    %92 = arith.maximumf %90, %91 : vector<16x384xf32>
    %c0_36 = arith.constant 0 : index
    %c0_37 = arith.constant 0 : index
    %93 = vector.load %arg7[%c0_36, %c0_37] : memref<384x128xf32, #tpu.memory_space<vmem>>, vector<384x128xf32>
    %cst_38 = arith.constant dense<0.000000e+00> : vector<16x128xf32>
    %94 = tpu.matmul %92, %93, %cst_38 {dimension_numbers = #tpu.dot_dimension_numbers<[1], [0], [0], [1], [0, 0, 1, 1], [], []>} : vector<16x384xf32>, vector<384x128xf32>, vector<16x128xf32> -> vector<16x128xf32>
    %c0_39 = arith.constant 0 : index
    %c0_40 = arith.constant 0 : index
    %95 = vector.load %arg8[%c0_39, %c0_40] : memref<1x128xf32, #tpu.memory_space<vmem>>, vector<1x128xf32>
    %96 = vector.broadcast %95 : vector<1x128xf32> to vector<16x128xf32>
    %97 = arith.addf %94, %96 : vector<16x128xf32>
    %98 = vector.extract_strided_slice %4 {offsets = [1, 8], sizes = [16, 128], strides = [1, 1]} : vector<18x144xf32> to vector<16x128xf32>
    %99 = arith.addf %97, %98 : vector<16x128xf32>
    %c0_41 = arith.constant 0 : index
    %c0_42 = arith.constant 0 : index
    %c0_43 = arith.constant 0 : index
    %100 = vector.load %arg9[%c0_41, %c0_42, %c0_43] : memref<1x16x128xf32, #tpu.memory_space<vmem>>, vector<1x16x128xf32>
    %101 = vector.shape_cast %100 : vector<1x16x128xf32> to vector<16x128xf32>
    %102 = vector.shape_cast %99 : vector<16x128xf32> to vector<1x16x128xf32>
    tpu.vector_store %arg9[%c0_41, %c0_42, %c0_43], %102 {strides = array<i32>} : memref<1x16x128xf32, #tpu.memory_space<vmem>>, vector<1x16x128xf32>,
    return
  }
  func.func @transform_0(%arg0: i32, %arg1: i32) -> (i32, i32, i32) {
    %c0_i32 = arith.constant 0 : i32
    %c0_i32_0 = arith.constant 0 : i32
    %c0_i32_1 = arith.constant 0 : i32
    return %arg0, %c0_i32, %c0_i32_0 : i32, i32, i32
  }
  func.func @transform_1(%arg0: i32, %arg1: i32) -> (i32, i32) {
    %c0_i32 = arith.constant 0 : i32
    %c0_i32_0 = arith.constant 0 : i32
    %c0_i32_1 = arith.constant 0 : i32
    return %c0_i32, %c0_i32_0 : i32, i32
  }
  func.func @transform_2(%arg0: i32, %arg1: i32) -> (i32, i32) {
    %c0_i32 = arith.constant 0 : i32
    %c0_i32_0 = arith.constant 0 : i32
    %c0_i32_1 = arith.constant 0 : i32
    return %c0_i32, %c0_i32_0 : i32, i32
  }
  func.func @transform_3(%arg0: i32, %arg1: i32) -> (i32, i32, i32) {
    %c0_i32 = arith.constant 0 : i32
    %c0_i32_0 = arith.constant 0 : i32
    %c0_i32_1 = arith.constant 0 : i32
    %c0_i32_2 = arith.constant 0 : i32
    return %c0_i32, %c0_i32_0, %c0_i32_1 : i32, i32, i32
  }
  func.func @transform_4(%arg0: i32, %arg1: i32) -> (i32, i32) {
    %c0_i32 = arith.constant 0 : i32
    %c0_i32_0 = arith.constant 0 : i32
    %c0_i32_1 = arith.constant 0 : i32
    return %c0_i32, %c0_i32_0 : i32, i32
  }
  func.func @transform_5(%arg0: i32, %arg1: i32) -> (i32, i32) {
    %c0_i32 = arith.constant 0 : i32
    %c0_i32_0 = arith.constant 0 : i32
    %c0_i32_1 = arith.constant 0 : i32
    return %c0_i32, %c0_i32_0 : i32, i32
  }
  func.func @transform_6(%arg0: i32, %arg1: i32) -> (i32, i32) {
    %c0_i32 = arith.constant 0 : i32
    %c0_i32_0 = arith.constant 0 : i32
    %c0_i32_1 = arith.constant 0 : i32
    return %c0_i32, %c0_i32_0 : i32, i32
  }
  func.func @transform_7(%arg0: i32, %arg1: i32) -> (i32, i32, i32) {
    %c0_i32 = arith.constant 0 : i32
    %c0_i32_0 = arith.constant 0 : i32
    return %arg0, %arg1, %c0_i32 : i32, i32, i32
  }
}

</mosaic_0001>

<llo_original>
// kernel: tile.19
$region0: #{tile.19}
  %s0 = inlined_call_operand.vmem [shape: f32[3,3,16,24], index: 0, kind: input, shape index: {}]
  %s1 = inlined_call_operand.vmem [shape: f32[3,3,384], index: 1, kind: output, shape index: {}]
  $region1: #{tile.19} parent=0
    #allocation0 [shape = 'u8[36864]{0}', space=vmem, size = 0x9000, scoped, tag = 'scoped mem for output reshape']
    %s2 = smov 3
    %v3 = vld [vmem:[%s0] ss:$16 sm:%s2]
    %s4 = smov 12
    %v5 = vld [vmem:[%s0] ss:$16 sm:%s4]
    %vm6 = vcmask 1043458
    %v7 = vsel %vm6, %v5, %v3
    %s8 = smov 48
    %v9 = vld [vmem:[%s0] ss:$16 sm:%s8]
    %vm10 = vcmask 1045508
    %v11 = vsel %vm10, %v9, %v7
    %s12 = smov 192
    %v13 = vld [vmem:[%s0] ss:$16 sm:%s12]
    %vm14 = vcmask 1047558
    %v15 = vsel %vm14, %v13, %v11
    %vm16 = vcmask 195584
    %17 = vst.msk [vmem:[#allocation0] sm:$0x7] %vm16, %v15
    %s18 = scalar_lea.vmem [#allocation0], 21
    %19 = vst.msk [vmem:[%s18] sm:$0x38] %vm16, %v15
    %s20 = scalar_lea.vmem [#allocation0], 42
    %21 = vst.msk [vmem:[%s20] sm:$0xc0] %vm16, %v15
    %s22 = scalar_lea.vmem %s0, 128
    %v23 = vld [vmem:[%s22] sm:$0x1]
    %vm24 = vcmask 195584
    %s25 = scalar_lea.vmem [#allocation0], 50
    %26 = vst.msk [vmem:[%s25] sm:$0x1] %vm24, %v23
    %s27 = scalar_lea.vmem %s0, 53
    %s28 = smov 3
    %v29 = vld [vmem:[%s27] ss:$16 sm:%s28]
    %s30 = scalar_lea.vmem %s0, 245
    %s31 = smov 12
    %v32 = vld [vmem:[%s30] ss:$-80 sm:%s31]
    %vm33 = vcmask 1043458
    %v34 = vsel %vm33, %v32, %v29
    %s35 = scalar_lea.vmem %s0, 4294967253
    %s36 = smov 48
    %v37 = vld [vmem:[%s35] ss:$16 sm:%s36]
    %vm38 = vcmask 1045508
    %v39 = vsel %vm38, %v37, %v34
    %s40 = scalar_lea.vmem %s0, 5
    %s41 = smov 192
    %v42 = vld [vmem:[%s40] ss:$16 sm:%s41]
    %vm43 = vcmask 1047558
    %v44 = vsel %vm43, %v42, %v39
    %s45 = scalar_lea.vmem %s0, 5
    %s46 = smov 3
    %v47 = vld [vmem:[%s45] ss:$16 sm:%s46]
    %s48 = scalar_lea.vmem %s0, 35
    %v49 = vld [vmem:[%s48] sm:$0x4]
    %vm50 = vcmask 1042434
    %v51 = vsel %vm50, %v49, %v47
    %s52 = scalar_lea.vmem %s0, 53
    %s53 = smov 24
    %v54 = vld [vmem:[%s52] ss:$16 sm:%s53]
    %vm55 = vcmask 1044483
    %v56 = vsel %vm55, %v54, %v51
    %s57 = scalar_lea.vmem %s0, 533
    %s58 = smov 96
    %v59 = vld [vmem:[%s57] ss:$-80 sm:%s58]
    %vm60 = vcmask 1046533
    %v61 = vsel %vm60, %v59, %v56
    %s62 = scalar_lea.vmem %s0, 62
    %v63 = vld [vmem:[%s62] sm:$0x80]
    %vm64 = vcmask 1047559
    %v65 = vsel %vm64, %v63, %v61
    %vm66 = vcmask 64512
    %v67 = vsel %vm66, %v65, %v44
    %68 = vrot.lane.b32.xlu0 %v67, 120
    %v69 = vpop.permute.xlu0 %68
    %vm70 = vcmask 130048
    %s71 = scalar_lea.vmem [#allocation0], 32
    %72 = vst.msk [vmem:[%s71] sm:$0x7] %vm70, %v69
    %s73 = scalar_lea.vmem [#allocation0], 5
    %74 = vst.msk [vmem:[%s73] sm:$0x38] %vm70, %v69
    %s75 = scalar_lea.vmem [#allocation0], 50
    %76 = vst.msk [vmem:[%s75] sm:$0xc0] %vm70, %v69
    %vm77 = vcmask 1048512
    %78 = vst.msk [vmem:[#allocation0] sm:$0x7] %vm77, %v69
    %s79 = scalar_lea.vmem [#allocation0], 45
    %80 = vst.msk [vmem:[%s79] sm:$0x38] %vm77, %v69
    %s81 = scalar_lea.vmem [#allocation0], 18
    %82 = vst.msk [vmem:[%s81] sm:$0xc0] %vm77, %v69
    %s83 = scalar_lea.vmem %s0, 133
    %v84 = vld [vmem:[%s83] sm:$0x1]
    %s85 = scalar_lea.vmem %s0, 85
    %v86 = vld [vmem:[%s85] sm:$0x1]
    %vm87 = vcmask 64512
    %v88 = vsel %vm87, %v86, %v84
    %89 = vrot.lane.b32.xlu0 %v88, 120
    %v90 = vpop.permute.xlu0 %89
    %vm91 = vcmask 130048
    %s92 = scalar_lea.vmem [#allocation0], 58
    %93 = vst.msk [vmem:[%s92] sm:$0x1] %vm91, %v90
    %vm94 = vcmask 1048512
    %s95 = scalar_lea.vmem [#allocation0], 26
    %96 = vst.msk [vmem:[%s95] sm:$0x1] %vm94, %v90
    %s97 = scalar_lea.vmem %s0, 106
    %s98 = smov 3
    %v99 = vld [vmem:[%s97] ss:$16 sm:%s98]
    %s100 = scalar_lea.vmem %s0, 298
    %s101 = smov 12
    %v102 = vld [vmem:[%s100] ss:$-80 sm:%s101]
    %vm103 = vcmask 1043458
    %v104 = vsel %vm103, %v102, %v99
    %s105 = scalar_lea.vmem %s0, 10
    %s106 = smov 48
    %v107 = vld [vmem:[%s105] ss:$16 sm:%s106]
    %vm108 = vcmask 1045508
    %v109 = vsel %vm108, %v107, %v104
    %s110 = scalar_lea.vmem %s0, 4294967210
    %s111 = smov 192
    %v112 = vld [vmem:[%s110] ss:$16 sm:%s111]
    %vm113 = vcmask 1047558
    %v114 = vsel %vm113, %v112, %v109
    %s115 = scalar_lea.vmem %s0, 58
    %s116 = smov 3
    %v117 = vld [vmem:[%s115] ss:$16 sm:%s116]
    %s118 = scalar_lea.vmem %s0, 250
    %s119 = smov 12
    %v120 = vld [vmem:[%s118] ss:$-80 sm:%s119]
    %vm121 = vcmask 1043458
    %v122 = vsel %vm121, %v120, %v117
    %s123 = scalar_lea.vmem %s0, 4294967258
    %s124 = smov 48
    %v125 = vld [vmem:[%s123] ss:$16 sm:%s124]
    %vm126 = vcmask 1045508
    %v127 = vsel %vm126, %v125, %v122
    %s128 = scalar_lea.vmem %s0, 10
    %s129 = smov 192
    %v130 = vld [vmem:[%s128] ss:$16 sm:%s129]
    %vm131 = vcmask 1047558
    %v132 = vsel %vm131, %v130, %v127
    %vm133 = vcmask 130048
    %v134 = vsel %vm133, %v132, %v114
    %135 = vrot.lane.b32.xlu0 %v134, 112
    %v136 = vpop.permute.xlu0 %135
    %vm137 = vcmask 64512
    %s138 = scalar_lea.vmem [#allocation0], 64
    %139 = vst.msk [vmem:[%s138] sm:$0x7] %vm137, %v136
    %s140 = scalar_lea.vmem [#allocation0], 37
    %141 = vst.msk [vmem:[%s140] sm:$0x38] %vm137, %v136
    %s142 = scalar_lea.vmem [#allocation0], 10
    %143 = vst.msk [vmem:[%s142] sm:$0xc0] %vm137, %v136
    %vm144 = vcmask 1048448
    %s145 = scalar_lea.vmem [#allocation0], 32
    %146 = vst.msk [vmem:[%s145] sm:$0x7] %vm144, %v136
    %s147 = scalar_lea.vmem [#allocation0], 5
    %148 = vst.msk [vmem:[%s147] sm:$0x38] %vm144, %v136
    %s149 = scalar_lea.vmem [#allocation0], 50
    %150 = vst.msk [vmem:[%s149] sm:$0xc0] %vm144, %v136
    %s151 = scalar_lea.vmem %s0, 42
    %v152 = vld [vmem:[%s151] sm:$0x1]
    %s153 = scalar_lea.vmem %s0, 138
    %v154 = vld [vmem:[%s153] sm:$0x1]
    %vm155 = vcmask 130048
    %v156 = vsel %vm155, %v154, %v152
    %157 = vrot.lane.b32.xlu0 %v156, 112
    %v158 = vpop.permute.xlu0 %157
    %vm159 = vcmask 64512
    %s160 = scalar_lea.vmem [#allocation0], 18
    %161 = vst.msk [vmem:[%s160] sm:$0x1] %vm159, %v158
    %vm162 = vcmask 1048448
    %s163 = scalar_lea.vmem [#allocation0], 58
    %164 = vst.msk [vmem:[%s163] sm:$0x1] %vm162, %v158
    %s165 = scalar_lea.vmem %s0, 111
    %s166 = smov 3
    %v167 = vld [vmem:[%s165] ss:$16 sm:%s166]
    %s168 = scalar_lea.vmem %s0, 303
    %s169 = smov 12
    %v170 = vld [vmem:[%s168] ss:$-80 sm:%s169]
    %vm171 = vcmask 1043458
    %v172 = vsel %vm171, %v170, %v167
    %s173 = scalar_lea.vmem %s0, 15
    %s174 = smov 48
    %v175 = vld [vmem:[%s173] ss:$16 sm:%s174]
    %vm176 = vcmask 1045508
    %v177 = vsel %vm176, %v175, %v172
    %s178 = scalar_lea.vmem %s0, 4294967215
    %s179 = smov 192
    %v180 = vld [vmem:[%s178] ss:$16 sm:%s179]
    %vm181 = vcmask 1047558
    %v182 = vsel %vm181, %v180, %v177
    %183 = vrot.lane.b32.xlu0 %v182, 104
    %v184 = vpop.permute.xlu0 %183
    %vm185 = vcmask 1048384
    %s186 = scalar_lea.vmem [#allocation0], 64
    %187 = vst.msk [vmem:[%s186] sm:$0x7] %vm185, %v184
    %s188 = scalar_lea.vmem [#allocation0], 37
    %189 = vst.msk [vmem:[%s188] sm:$0x38] %vm185, %v184
    %s190 = scalar_lea.vmem [#allocation0], 10
    %191 = vst.msk [vmem:[%s190] sm:$0xc0] %vm185, %v184
    %s192 = scalar_lea.vmem %s0, 47
    %v193 = vld [vmem:[%s192] sm:$0x1]
    %194 = vrot.lane.b32.xlu0 %v193, 104
    %v195 = vpop.permute.xlu0 %194
    %vm196 = vcmask 1048384
    %s197 = scalar_lea.vmem [#allocation0], 18
    %198 = vst.msk [vmem:[%s197] sm:$0x1] %vm196, %v195
    %s199 = scalar_lea.vmem %s0, 4
    %s200 = smov 3
    %v201 = vld [vmem:[%s199] ss:$16 sm:%s200]
    %s202 = scalar_lea.vmem %s0, 34
    %v203 = vld [vmem:[%s202] sm:$0x4]
    %vm204 = vcmask 1042434
    %v205 = vsel %vm204, %v203, %v201
    %s206 = scalar_lea.vmem %s0, 52
    %s207 = smov 24
    %v208 = vld [vmem:[%s206] ss:$16 sm:%s207]
    %vm209 = vcmask 1044483
    %v210 = vsel %vm209, %v208, %v205
    %s211 = scalar_lea.vmem %s0, 532
    %s212 = smov 96
    %v213 = vld [vmem:[%s211] ss:$-80 sm:%s212]
    %vm214 = vcmask 1046533
    %v215 = vsel %vm214, %v213, %v210
    %s216 = scalar_lea.vmem %s0, 61
    %v217 = vld [vmem:[%s216] sm:$0x80]
    %vm218 = vcmask 1047559
    %v219 = vsel %vm218, %v217, %v215
    %220 = vrot.lane.b32.xlu0 %v219, 96
    %v221 = vpop.permute.xlu0 %220
    %vm222 = vcmask 982784
    %223 = vst.msk [vmem:[#allocation0] sm:$0x7] %vm222, %v221
    %s224 = scalar_lea.vmem [#allocation0], 45
    %225 = vst.msk [vmem:[%s224] sm:$0x38] %vm222, %v221
    %s226 = scalar_lea.vmem [#allocation0], 18
    %227 = vst.msk [vmem:[%s226] sm:$0xc0] %vm222, %v221
    %s228 = scalar_lea.vmem %s0, 84
    %v229 = vld [vmem:[%s228] sm:$0x1]
    %230 = vrot.lane.b32.xlu0 %v229, 96
    %v231 = vpop.permute.xlu0 %230
    %vm232 = vcmask 982784
    %s233 = scalar_lea.vmem [#allocation0], 26
    %234 = vst.msk [vmem:[%s233] sm:$0x1] %vm232, %v231
    %s235 = scalar_lea.vmem %s0, 57
    %s236 = smov 3
    %v237 = vld [vmem:[%s235] ss:$16 sm:%s236]
    %s238 = scalar_lea.vmem %s0, 249
    %s239 = smov 12
    %v240 = vld [vmem:[%s238] ss:$-80 sm:%s239]
    %vm241 = vcmask 1043458
    %v242 = vsel %vm241, %v240, %v237
    %s243 = scalar_lea.vmem %s0, 4294967257
    %s244 = smov 48
    %v245 = vld [vmem:[%s243] ss:$16 sm:%s244]
    %vm246 = vcmask 1045508
    %v247 = vsel %vm246, %v245, %v242
    %s248 = scalar_lea.vmem %s0, 9
    %s249 = smov 192
    %v250 = vld [vmem:[%s248] ss:$16 sm:%s249]
    %vm251 = vcmask 1047558
    %v252 = vsel %vm251, %v250, %v247
    %253 = vrot.lane.b32.xlu0 %v252, 88
    %v254 = vpop.permute.xlu0 %253
    %vm255 = vcmask 917184
    %s256 = scalar_lea.vmem [#allocation0], 32
    %257 = vst.msk [vmem:[%s256] sm:$0x7] %vm255, %v254
    %s258 = scalar_lea.vmem [#allocation0], 5
    %259 = vst.msk [vmem:[%s258] sm:$0x38] %vm255, %v254
    %s260 = scalar_lea.vmem [#allocation0], 50
    %261 = vst.msk [vmem:[%s260] sm:$0xc0] %vm255, %v254
    %s262 = scalar_lea.vmem %s0, 137
    %v263 = vld [vmem:[%s262] sm:$0x1]
    %264 = vrot.lane.b32.xlu0 %v263, 88
    %v265 = vpop.permute.xlu0 %264
    %vm266 = vcmask 917184
    %s267 = scalar_lea.vmem [#allocation0], 58
    %268 = vst.msk [vmem:[%s267] sm:$0x1] %vm266, %v265
    %s269 = scalar_lea.vmem %s0, 110
    %s270 = smov 3
    %v271 = vld [vmem:[%s269] ss:$16 sm:%s270]
    %s272 = scalar_lea.vmem %s0, 302
    %s273 = smov 12
    %v274 = vld [vmem:[%s272] ss:$-80 sm:%s273]
    %vm275 = vcmask 1043458
    %v276 = vsel %vm275, %v274, %v271
    %s277 = scalar_lea.vmem %s0, 14
    %s278 = smov 48
    %v279 = vld [vmem:[%s277] ss:$16 sm:%s278]
    %vm280 = vcmask 1045508
    %v281 = vsel %vm280, %v279, %v276
    %s282 = scalar_lea.vmem %s0, 4294967214
    %s283 = smov 192
    %v284 = vld [vmem:[%s282] ss:$16 sm:%s283]
    %vm285 = vcmask 1047558
    %v286 = vsel %vm285, %v284, %v281
    %287 = vrot.lane.b32.xlu0 %v286, 80
    %v288 = vpop.permute.xlu0 %287
    %vm289 = vcmask 851584
    %s290 = scalar_lea.vmem [#allocation0], 64
    %291 = vst.msk [vmem:[%s290] sm:$0x7] %vm289, %v288
    %s292 = scalar_lea.vmem [#allocation0], 37
    %293 = vst.msk [vmem:[%s292] sm:$0x38] %vm289, %v288
    %s294 = scalar_lea.vmem [#allocation0], 10
    %295 = vst.msk [vmem:[%s294] sm:$0xc0] %vm289, %v288
    %s296 = scalar_lea.vmem %s0, 46
    %v297 = vld [vmem:[%s296] sm:$0x1]
    %298 = vrot.lane.b32.xlu0 %v297, 80
    %v299 = vpop.permute.xlu0 %298
    %vm300 = vcmask 851584
    %s301 = scalar_lea.vmem [#allocation0], 18
    %302 = vst.msk [vmem:[%s301] sm:$0x1] %vm300, %v299
    %s303 = scalar_lea.vmem %s0, 3
    %s304 = smov 3
    %v305 = vld [vmem:[%s303] ss:$16 sm:%s304]
    %s306 = scalar_lea.vmem %s0, 33
    %v307 = vld [vmem:[%s306] sm:$0x4]
    %vm308 = vcmask 1042434
    %v309 = vsel %vm308, %v307, %v305
    %s310 = scalar_lea.vmem %s0, 51
    %s311 = smov 24
    %v312 = vld [vmem:[%s310] ss:$16 sm:%s311]
    %vm313 = vcmask 1044483
    %v314 = vsel %vm313, %v312, %v309
    %s315 = scalar_lea.vmem %s0, 531
    %s316 = smov 96
    %v317 = vld [vmem:[%s315] ss:$-80 sm:%s316]
    %vm318 = vcmask 1046533
    %v319 = vsel %vm318, %v317, %v314
    %s320 = scalar_lea.vmem %s0, 60
    %v321 = vld [vmem:[%s320] sm:$0x80]
    %vm322 = vcmask 1047559
    %v323 = vsel %vm322, %v321, %v319
    %324 = vrot.lane.b32.xlu0 %v323, 72
    %v325 = vpop.permute.xlu0 %324
    %vm326 = vcmask 785984
    %327 = vst.msk [vmem:[#allocation0] sm:$0x7] %vm326, %v325
    %s328 = scalar_lea.vmem [#allocation0], 45
    %329 = vst.msk [vmem:[%s328] sm:$0x38] %vm326, %v325
    %s330 = scalar_lea.vmem [#allocation0], 18
    %331 = vst.msk [vmem:[%s330] sm:$0xc0] %vm326, %v325
    %s332 = scalar_lea.vmem %s0, 83
    %v333 = vld [vmem:[%s332] sm:$0x1]
    %334 = vrot.lane.b32.xlu0 %v333, 72
    %v335 = vpop.permute.xlu0 %334
    %vm336 = vcmask 785984
    %s337 = scalar_lea.vmem [#allocation0], 26
    %338 = vst.msk [vmem:[%s337] sm:$0x1] %vm336, %v335
    %s339 = scalar_lea.vmem %s0, 56
    %s340 = smov 3
    %v341 = vld [vmem:[%s339] ss:$16 sm:%s340]
    %s342 = scalar_lea.vmem %s0, 248
    %s343 = smov 12
    %v344 = vld [vmem:[%s342] ss:$-80 sm:%s343]
    %vm345 = vcmask 1043458
    %v346 = vsel %vm345, %v344, %v341
    %s347 = scalar_lea.vmem %s0, 4294967256
    %s348 = smov 48
    %v349 = vld [vmem:[%s347] ss:$16 sm:%s348]
    %vm350 = vcmask 1045508
    %v351 = vsel %vm350, %v349, %v346
    %s352 = scalar_lea.vmem %s0, 8
    %s353 = smov 192
    %v354 = vld [vmem:[%s352] ss:$16 sm:%s353]
    %vm355 = vcmask 1047558
    %v356 = vsel %vm355, %v354, %v351
    %357 = vrot.lane.b32.xlu0 %v356, 64
    %v358 = vpop.permute.xlu0 %357
    %vm359 = vcmask 720384
    %s360 = scalar_lea.vmem [#allocation0], 32
    %361 = vst.msk [vmem:[%s360] sm:$0x7] %vm359, %v358
    %s362 = scalar_lea.vmem [#allocation0], 5
    %363 = vst.msk [vmem:[%s362] sm:$0x38] %vm359, %v358
    %s364 = scalar_lea.vmem [#allocation0], 50
    %365 = vst.msk [vmem:[%s364] sm:$0xc0] %vm359, %v358
    %s366 = scalar_lea.vmem %s0, 136
    %v367 = vld [vmem:[%s366] sm:$0x1]
    %368 = vrot.lane.b32.xlu0 %v367, 64
    %v369 = vpop.permute.xlu0 %368
    %vm370 = vcmask 720384
    %s371 = scalar_lea.vmem [#allocation0], 58
    %372 = vst.msk [vmem:[%s371] sm:$0x1] %vm370, %v369
    %s373 = scalar_lea.vmem %s0, 109
    %s374 = smov 3
    %v375 = vld [vmem:[%s373] ss:$16 sm:%s374]
    %s376 = scalar_lea.vmem %s0, 301
    %s377 = smov 12
    %v378 = vld [vmem:[%s376] ss:$-80 sm:%s377]
    %vm379 = vcmask 1043458
    %v380 = vsel %vm379, %v378, %v375
    %s381 = scalar_lea.vmem %s0, 13
    %s382 = smov 48
    %v383 = vld [vmem:[%s381] ss:$16 sm:%s382]
    %vm384 = vcmask 1045508
    %v385 = vsel %vm384, %v383, %v380
    %s386 = scalar_lea.vmem %s0, 4294967213
    %s387 = smov 192
    %v388 = vld [vmem:[%s386] ss:$16 sm:%s387]
    %vm389 = vcmask 1047558
    %v390 = vsel %vm389, %v388, %v385
    %391 = vrot.lane.b32.xlu0 %v390, 56
    %v392 = vpop.permute.xlu0 %391
    %vm393 = vcmask 654784
    %s394 = scalar_lea.vmem [#allocation0], 64
    %395 = vst.msk [vmem:[%s394] sm:$0x7] %vm393, %v392
    %s396 = scalar_lea.vmem [#allocation0], 37
    %397 = vst.msk [vmem:[%s396] sm:$0x38] %vm393, %v392
    %s398 = scalar_lea.vmem [#allocation0], 10
    %399 = vst.msk [vmem:[%s398] sm:$0xc0] %vm393, %v392
    %s400 = scalar_lea.vmem %s0, 45
    %v401 = vld [vmem:[%s400] sm:$0x1]
    %402 = vrot.lane.b32.xlu0 %v401, 56
    %v403 = vpop.permute.xlu0 %402
    %vm404 = vcmask 654784
    %s405 = scalar_lea.vmem [#allocation0], 18
    %406 = vst.msk [vmem:[%s405] sm:$0x1] %vm404, %v403
    %s407 = scalar_lea.vmem %s0, 2
    %s408 = smov 3
    %v409 = vld [vmem:[%s407] ss:$16 sm:%s408]
    %s410 = scalar_lea.vmem %s0, 32
    %v411 = vld [vmem:[%s410] sm:$0x4]
    %vm412 = vcmask 1042434
    %v413 = vsel %vm412, %v411, %v409
    %s414 = scalar_lea.vmem %s0, 50
    %s415 = smov 24
    %v416 = vld [vmem:[%s414] ss:$16 sm:%s415]
    %vm417 = vcmask 1044483
    %v418 = vsel %vm417, %v416, %v413
    %s419 = scalar_lea.vmem %s0, 530
    %s420 = smov 96
    %v421 = vld [vmem:[%s419] ss:$-80 sm:%s420]
    %vm422 = vcmask 1046533
    %v423 = vsel %vm422, %v421, %v418
    %s424 = scalar_lea.vmem %s0, 59
    %v425 = vld [vmem:[%s424] sm:$0x80]
    %vm426 = vcmask 1047559
    %v427 = vsel %vm426, %v425, %v423
    %428 = vrot.lane.b32.xlu0 %v427, 48
    %v429 = vpop.permute.xlu0 %428
    %vm430 = vcmask 589184
    %431 = vst.msk [vmem:[#allocation0] sm:$0x7] %vm430, %v429
    %s432 = scalar_lea.vmem [#allocation0], 45
    %433 = vst.msk [vmem:[%s432] sm:$0x38] %vm430, %v429
    %s434 = scalar_lea.vmem [#allocation0], 18
    %435 = vst.msk [vmem:[%s434] sm:$0xc0] %vm430, %v429
    %s436 = scalar_lea.vmem %s0, 82
    %v437 = vld [vmem:[%s436] sm:$0x1]
    %438 = vrot.lane.b32.xlu0 %v437, 48
    %v439 = vpop.permute.xlu0 %438
    %vm440 = vcmask 589184
    %s441 = scalar_lea.vmem [#allocation0], 26
    %442 = vst.msk [vmem:[%s441] sm:$0x1] %vm440, %v439
    %s443 = scalar_lea.vmem %s0, 55
    %s444 = smov 3
    %v445 = vld [vmem:[%s443] ss:$16 sm:%s444]
    %s446 = scalar_lea.vmem %s0, 247
    %s447 = smov 12
    %v448 = vld [vmem:[%s446] ss:$-80 sm:%s447]
    %vm449 = vcmask 1043458
    %v450 = vsel %vm449, %v448, %v445
    %s451 = scalar_lea.vmem %s0, 4294967255
    %s452 = smov 48
    %v453 = vld [vmem:[%s451] ss:$16 sm:%s452]
    %vm454 = vcmask 1045508
    %v455 = vsel %vm454, %v453, %v450
    %s456 = scalar_lea.vmem %s0, 7
    %s457 = smov 192
    %v458 = vld [vmem:[%s456] ss:$16 sm:%s457]
    %vm459 = vcmask 1047558
    %v460 = vsel %vm459, %v458, %v455
    %461 = vrot.lane.b32.xlu0 %v460, 40
    %v462 = vpop.permute.xlu0 %461
    %vm463 = vcmask 523584
    %s464 = scalar_lea.vmem [#allocation0], 32
    %465 = vst.msk [vmem:[%s464] sm:$0x7] %vm463, %v462
    %s466 = scalar_lea.vmem [#allocation0], 5
    %467 = vst.msk [vmem:[%s466] sm:$0x38] %vm463, %v462
    %s468 = scalar_lea.vmem [#allocation0], 50
    %469 = vst.msk [vmem:[%s468] sm:$0xc0] %vm463, %v462
    %s470 = scalar_lea.vmem %s0, 135
    %v471 = vld [vmem:[%s470] sm:$0x1]
    %472 = vrot.lane.b32.xlu0 %v471, 40
    %v473 = vpop.permute.xlu0 %472
    %vm474 = vcmask 523584
    %s475 = scalar_lea.vmem [#allocation0], 58
    %476 = vst.msk [vmem:[%s475] sm:$0x1] %vm474, %v473
    %s477 = scalar_lea.vmem %s0, 108
    %s478 = smov 3
    %v479 = vld [vmem:[%s477] ss:$16 sm:%s478]
    %s480 = scalar_lea.vmem %s0, 300
    %s481 = smov 12
    %v482 = vld [vmem:[%s480] ss:$-80 sm:%s481]
    %vm483 = vcmask 1043458
    %v484 = vsel %vm483, %v482, %v479
    %s485 = scalar_lea.vmem %s0, 12
    %s486 = smov 48
    %v487 = vld [vmem:[%s485] ss:$16 sm:%s486]
    %vm488 = vcmask 1045508
    %v489 = vsel %vm488, %v487, %v484
    %s490 = scalar_lea.vmem %s0, 4294967212
    %s491 = smov 192
    %v492 = vld [vmem:[%s490] ss:$16 sm:%s491]
    %vm493 = vcmask 1047558
    %v494 = vsel %vm493, %v492, %v489
    %495 = vrot.lane.b32.xlu0 %v494, 32
    %v496 = vpop.permute.xlu0 %495
    %vm497 = vcmask 457984
    %s498 = scalar_lea.vmem [#allocation0], 64
    %499 = vst.msk [vmem:[%s498] sm:$0x7] %vm497, %v496
    %s500 = scalar_lea.vmem [#allocation0], 37
    %501 = vst.msk [vmem:[%s500] sm:$0x38] %vm497, %v496
    %s502 = scalar_lea.vmem [#allocation0], 10
    %503 = vst.msk [vmem:[%s502] sm:$0xc0] %vm497, %v496
    %s504 = scalar_lea.vmem %s0, 44
    %v505 = vld [vmem:[%s504] sm:$0x1]
    %506 = vrot.lane.b32.xlu0 %v505, 32
    %v507 = vpop.permute.xlu0 %506
    %vm508 = vcmask 457984
    %s509 = scalar_lea.vmem [#allocation0], 18
    %510 = vst.msk [vmem:[%s509] sm:$0x1] %vm508, %v507
    %s511 = scalar_lea.vmem %s0, 1
    %s512 = smov 3
    %v513 = vld [vmem:[%s511] ss:$16 sm:%s512]
    %s514 = scalar_lea.vmem %s0, 31
    %v515 = vld [vmem:[%s514] sm:$0x4]
    %vm516 = vcmask 1042434
    %v517 = vsel %vm516, %v515, %v513
    %s518 = scalar_lea.vmem %s0, 49
    %s519 = smov 24
    %v520 = vld [vmem:[%s518] ss:$16 sm:%s519]
    %vm521 = vcmask 1044483
    %v522 = vsel %vm521, %v520, %v517
    %s523 = scalar_lea.vmem %s0, 529
    %s524 = smov 96
    %v525 = vld [vmem:[%s523] ss:$-80 sm:%s524]
    %vm526 = vcmask 1046533
    %v527 = vsel %vm526, %v525, %v522
    %s528 = scalar_lea.vmem %s0, 58
    %v529 = vld [vmem:[%s528] sm:$0x80]
    %vm530 = vcmask 1047559
    %v531 = vsel %vm530, %v529, %v527
    %532 = vrot.lane.b32.xlu0 %v531, 24
    %v533 = vpop.permute.xlu0 %532
    %vm534 = vcmask 392384
    %535 = vst.msk [vmem:[#allocation0] sm:$0x7] %vm534, %v533
    %s536 = scalar_lea.vmem [#allocation0], 45
    %537 = vst.msk [vmem:[%s536] sm:$0x38] %vm534, %v533
    %s538 = scalar_lea.vmem [#allocation0], 18
    %539 = vst.msk [vmem:[%s538] sm:$0xc0] %vm534, %v533
    %s540 = scalar_lea.vmem %s0, 81
    %v541 = vld [vmem:[%s540] sm:$0x1]
    %542 = vrot.lane.b32.xlu0 %v541, 24
    %v543 = vpop.permute.xlu0 %542
    %vm544 = vcmask 392384
    %s545 = scalar_lea.vmem [#allocation0], 26
    %546 = vst.msk [vmem:[%s545] sm:$0x1] %vm544, %v543
    %s547 = scalar_lea.vmem %s0, 54
    %s548 = smov 3
    %v549 = vld [vmem:[%s547] ss:$16 sm:%s548]
    %s550 = scalar_lea.vmem %s0, 246
    %s551 = smov 12
    %v552 = vld [vmem:[%s550] ss:$-80 sm:%s551]
    %vm553 = vcmask 1043458
    %v554 = vsel %vm553, %v552, %v549
    %s555 = scalar_lea.vmem %s0, 4294967254
    %s556 = smov 48
    %v557 = vld [vmem:[%s555] ss:$16 sm:%s556]
    %vm558 = vcmask 1045508
    %v559 = vsel %vm558, %v557, %v554
    %s560 = scalar_lea.vmem %s0, 6
    %s561 = smov 192
    %v562 = vld [vmem:[%s560] ss:$16 sm:%s561]
    %vm563 = vcmask 1047558
    %v564 = vsel %vm563, %v562, %v559
    %565 = vrot.lane.b32.xlu0 %v564, 16
    %v566 = vpop.permute.xlu0 %565
    %vm567 = vcmask 326784
    %s568 = scalar_lea.vmem [#allocation0], 32
    %569 = vst.msk [vmem:[%s568] sm:$0x7] %vm567, %v566
    %s570 = scalar_lea.vmem [#allocation0], 5
    %571 = vst.msk [vmem:[%s570] sm:$0x38] %vm567, %v566
    %s572 = scalar_lea.vmem [#allocation0], 50
    %573 = vst.msk [vmem:[%s572] sm:$0xc0] %vm567, %v566
    %s574 = scalar_lea.vmem %s0, 134
    %v575 = vld [vmem:[%s574] sm:$0x1]
    %576 = vrot.lane.b32.xlu0 %v575, 16
    %v577 = vpop.permute.xlu0 %576
    %vm578 = vcmask 326784
    %s579 = scalar_lea.vmem [#allocation0], 58
    %580 = vst.msk [vmem:[%s579] sm:$0x1] %vm578, %v577
    %s581 = scalar_lea.vmem %s0, 107
    %s582 = smov 3
    %v583 = vld [vmem:[%s581] ss:$16 sm:%s582]
    %s584 = scalar_lea.vmem %s0, 299
    %s585 = smov 12
    %v586 = vld [vmem:[%s584] ss:$-80 sm:%s585]
    %vm587 = vcmask 1043458
    %v588 = vsel %vm587, %v586, %v583
    %s589 = scalar_lea.vmem %s0, 11
    %s590 = smov 48
    %v591 = vld [vmem:[%s589] ss:$16 sm:%s590]
    %vm592 = vcmask 1045508
    %v593 = vsel %vm592, %v591, %v588
    %s594 = scalar_lea.vmem %s0, 4294967211
    %s595 = smov 192
    %v596 = vld [vmem:[%s594] ss:$16 sm:%s595]
    %vm597 = vcmask 1047558
    %v598 = vsel %vm597, %v596, %v593
    %599 = vrot.lane.b32.xlu0 %v598, 8
    %v600 = vpop.permute.xlu0 %599
    %vm601 = vcmask 261184
    %s602 = scalar_lea.vmem [#allocation0], 64
    %603 = vst.msk [vmem:[%s602] sm:$0x7] %vm601, %v600
    %s604 = scalar_lea.vmem [#allocation0], 37
    %605 = vst.msk [vmem:[%s604] sm:$0x38] %vm601, %v600
    %s606 = scalar_lea.vmem [#allocation0], 10
    %607 = vst.msk [vmem:[%s606] sm:$0xc0] %vm601, %v600
    %s608 = scalar_lea.vmem %s0, 43
    %v609 = vld [vmem:[%s608] sm:$0x1]
    %610 = vrot.lane.b32.xlu0 %v609, 8
    %v611 = vpop.permute.xlu0 %610
    %vm612 = vcmask 261184
    %s613 = scalar_lea.vmem [#allocation0], 18
    %614 = vst.msk [vmem:[%s613] sm:$0x1] %vm612, %v611
    %s616 = sshllo.u32 0, 4
    %v618 = vld [vmem:[#allocation0] sm:%s616]
    %s619 = sshllo.u32 0, 4
    %620 = vst [vmem:[%s1] sm:%s619] %v618
    %s621 = scalar_lea.vmem [#allocation0], 8
    %v622 = vld [vmem:[%s621] sm:%s616]
    %s623 = sshllo.u32 0, 4
    %s624 = scalar_lea.vmem %s1, 4
    %625 = vst [vmem:[%s624] sm:%s623] %v622
    %s626 = scalar_lea.vmem [#allocation0], 16
    %v627 = vld [vmem:[%s626] sm:%s616]
    %s628 = sshllo.u32 0, 4
    %s629 = smul.addr 4, 2
    %s630 = scalar_lea.vmem %s1, %s629
    %631 = vst [vmem:[%s630] sm:%s628] %v627
    %s632 = scalar_lea.vmem [#allocation0], 24
    %v633 = vld [vmem:[%s632] sm:%s616]
    %s634 = sshllo.u32 0, 4
    %s635 = smul.addr 4, 3
    %s636 = scalar_lea.vmem %s1, %s635
    %637 = vst [vmem:[%s636] sm:%s634] %v633
    %s638 = scalar_lea.vmem [#allocation0], 32
    %v639 = vld [vmem:[%s638] sm:%s616]
    %s640 = sshllo.u32 0, 4
    %s641 = smul.addr 4, 4
    %s642 = scalar_lea.vmem %s1, %s641
    %643 = vst [vmem:[%s642] sm:%s640] %v639
    %s644 = scalar_lea.vmem [#allocation0], 40
    %v645 = vld [vmem:[%s644] sm:%s616]
    %s646 = sshllo.u32 0, 4
    %s647 = smul.addr 4, 5
    %s648 = scalar_lea.vmem %s1, %s647
    %649 = vst [vmem:[%s648] sm:%s646] %v645
    %s650 = scalar_lea.vmem [#allocation0], 48
    %v651 = vld [vmem:[%s650] sm:%s616]
    %s652 = sshllo.u32 0, 4
    %s653 = smul.addr 4, 6
    %s654 = scalar_lea.vmem %s1, %s653
    %655 = vst [vmem:[%s654] sm:%s652] %v651
    %s656 = scalar_lea.vmem [#allocation0], 56
    %v657 = vld [vmem:[%s656] sm:%s616]
    %s658 = sshllo.u32 0, 4
    %s659 = smul.addr 4, 7
    %s660 = scalar_lea.vmem %s1, %s659
    %661 = vst [vmem:[%s660] sm:%s658] %v657
    %s662 = scalar_lea.vmem [#allocation0], 64
    %v663 = vld [vmem:[%s662] sm:%s616]
    %s664 = sshllo.u32 0, 4
    %s665 = smul.addr 4, 8
    %s666 = scalar_lea.vmem %s1, %s665
    %667 = vst [vmem:[%s666] sm:%s664] %v663

// kernel: tile.23
$region0: #{tile.23}
  #allocation0 [shape = 's32[1]{0}', space=sflag, size = 0x4, scoped, tag = 'scoped memory for tile.23']
  %s0 = inlined_call_operand.vmem [shape: f32[24], index: 0, kind: input, shape index: {}]
  %s1 = inlined_call_operand.vmem [shape: f32[16,24], index: 1, kind: output, shape index: {}]
  // Predicated region
  $region2: #{tile.23} parent=0 // pred_check
    _
  $region3: #{tile.23} parent=0 // pred_check_branch
    %3 = sbr.rel (0) target = $region5
  $region4: #{tile.23} parent=0 // pred_region
    _
  $region5: #{tile.23} parent=0 // pred_fallthru
    _
  %v4 = vld [vmem:[%s0] ss:$0 sm:$0xff]
  %5 = vst [vmem:[%s1] sm:$0xff] %v4
  %s6 = scalar_lea.vmem %s1, 8
  %7 = vst [vmem:[%s6] sm:$0xff] %v4

// kernel: tile.24
$region0: #{tile.24}
  %s0 = inlined_call_operand.vmem [shape: f32[16,24], index: 0, kind: input, shape index: {}]
  %s1 = inlined_call_operand.vmem [shape: f32[1,384], index: 1, kind: output, shape index: {}]
  $region1: #{tile.24} parent=0
    #allocation0 [shape = 'u8[12288]{0}', space=vmem, size = 0x3000, scoped, tag = 'scoped mem for output reshape']
    %v2 = vld [vmem:[%s0] sm:$0x1]
    %vm3 = vcmask 195584
    %4 = vst.msk [vmem:[#allocation0] sm:$0x1] %vm3, %v2
    %s5 = scalar_lea.vmem %s0, 5
    %v6 = vld [vmem:[%s5] sm:$0x1]
    %s7 = scalar_lea.vmem %s0, 5
    %v8 = vld [vmem:[%s7] sm:$0x1]
    %vm9 = vcmask 64512
    %v10 = vsel %vm9, %v8, %v6
    %11 = vrot.lane.b32.xlu0 %v10, 120
    %v12 = vpop.permute.xlu0 %11
    %vm13 = vcmask 130048
    %s14 = scalar_lea.vmem [#allocation0], 8
    %15 = vst.msk [vmem:[%s14] sm:$0x1] %vm13, %v12
    %vm16 = vcmask 1048512
    %17 = vst.msk [vmem:[#allocation0] sm:$0x1] %vm16, %v12
    %s18 = scalar_lea.vmem %s0, 10
    %v19 = vld [vmem:[%s18] sm:$0x1]
    %s20 = scalar_lea.vmem %s0, 10
    %v21 = vld [vmem:[%s20] sm:$0x1]
    %vm22 = vcmask 130048
    %v23 = vsel %vm22, %v21, %v19
    %24 = vrot.lane.b32.xlu0 %v23, 112
    %v25 = vpop.permute.xlu0 %24
    %vm26 = vcmask 64512
    %s27 = scalar_lea.vmem [#allocation0], 16
    %28 = vst.msk [vmem:[%s27] sm:$0x1] %vm26, %v25
    %vm29 = vcmask 1048448
    %s30 = scalar_lea.vmem [#allocation0], 8
    %31 = vst.msk [vmem:[%s30] sm:$0x1] %vm29, %v25
    %s32 = scalar_lea.vmem %s0, 15
    %v33 = vld [vmem:[%s32] sm:$0x1]
    %34 = vrot.lane.b32.xlu0 %v33, 104
    %v35 = vpop.permute.xlu0 %34
    %vm36 = vcmask 1048384
    %s37 = scalar_lea.vmem [#allocation0], 16
    %38 = vst.msk [vmem:[%s37] sm:$0x1] %vm36, %v35
    %s39 = scalar_lea.vmem %s0, 4
    %v40 = vld [vmem:[%s39] sm:$0x1]
    %41 = vrot.lane.b32.xlu0 %v40, 96
    %v42 = vpop.permute.xlu0 %41
    %vm43 = vcmask 982784
    %44 = vst.msk [vmem:[#allocation0] sm:$0x1] %vm43, %v42
    %s45 = scalar_lea.vmem %s0, 9
    %v46 = vld [vmem:[%s45] sm:$0x1]
    %47 = vrot.lane.b32.xlu0 %v46, 88
    %v48 = vpop.permute.xlu0 %47
    %vm49 = vcmask 917184
    %s50 = scalar_lea.vmem [#allocation0], 8
    %51 = vst.msk [vmem:[%s50] sm:$0x1] %vm49, %v48
    %s52 = scalar_lea.vmem %s0, 14
    %v53 = vld [vmem:[%s52] sm:$0x1]
    %54 = vrot.lane.b32.xlu0 %v53, 80
    %v55 = vpop.permute.xlu0 %54
    %vm56 = vcmask 851584
    %s57 = scalar_lea.vmem [#allocation0], 16
    %58 = vst.msk [vmem:[%s57] sm:$0x1] %vm56, %v55
    %s59 = scalar_lea.vmem %s0, 3
    %v60 = vld [vmem:[%s59] sm:$0x1]
    %61 = vrot.lane.b32.xlu0 %v60, 72
    %v62 = vpop.permute.xlu0 %61
    %vm63 = vcmask 785984
    %64 = vst.msk [vmem:[#allocation0] sm:$0x1] %vm63, %v62
    %s65 = scalar_lea.vmem %s0, 8
    %v66 = vld [vmem:[%s65] sm:$0x1]
    %67 = vrot.lane.b32.xlu0 %v66, 64
    %v68 = vpop.permute.xlu0 %67
    %vm69 = vcmask 720384
    %s70 = scalar_lea.vmem [#allocation0], 8
    %71 = vst.msk [vmem:[%s70] sm:$0x1] %vm69, %v68
    %s72 = scalar_lea.vmem %s0, 13
    %v73 = vld [vmem:[%s72] sm:$0x1]
    %74 = vrot.lane.b32.xlu0 %v73, 56
    %v75 = vpop.permute.xlu0 %74
    %vm76 = vcmask 654784
    %s77 = scalar_lea.vmem [#allocation0], 16
    %78 = vst.msk [vmem:[%s77] sm:$0x1] %vm76, %v75
    %s79 = scalar_lea.vmem %s0, 2
    %v80 = vld [vmem:[%s79] sm:$0x1]
    %81 = vrot.lane.b32.xlu0 %v80, 48
    %v82 = vpop.permute.xlu0 %81
    %vm83 = vcmask 589184
    %84 = vst.msk [vmem:[#allocation0] sm:$0x1] %vm83, %v82
    %s85 = scalar_lea.vmem %s0, 7
    %v86 = vld [vmem:[%s85] sm:$0x1]
    %87 = vrot.lane.b32.xlu0 %v86, 40
    %v88 = vpop.permute.xlu0 %87
    %vm89 = vcmask 523584
    %s90 = scalar_lea.vmem [#allocation0], 8
    %91 = vst.msk [vmem:[%s90] sm:$0x1] %vm89, %v88
    %s92 = scalar_lea.vmem %s0, 12
    %v93 = vld [vmem:[%s92] sm:$0x1]
    %94 = vrot.lane.b32.xlu0 %v93, 32
    %v95 = vpop.permute.xlu0 %94
    %vm96 = vcmask 457984
    %s97 = scalar_lea.vmem [#allocation0], 16
    %98 = vst.msk [vmem:[%s97] sm:$0x1] %vm96, %v95
    %s99 = scalar_lea.vmem %s0, 1
    %v100 = vld [vmem:[%s99] sm:$0x1]
    %101 = vrot.lane.b32.xlu0 %v100, 24
    %v102 = vpop.permute.xlu0 %101
    %vm103 = vcmask 392384
    %104 = vst.msk [vmem:[#allocation0] sm:$0x1] %vm103, %v102
    %s105 = scalar_lea.vmem %s0, 6
    %v106 = vld [vmem:[%s105] sm:$0x1]
    %107 = vrot.lane.b32.xlu0 %v106, 16
    %v108 = vpop.permute.xlu0 %107
    %vm109 = vcmask 326784
    %s110 = scalar_lea.vmem [#allocation0], 8
    %111 = vst.msk [vmem:[%s110] sm:$0x1] %vm109, %v108
    %s112 = scalar_lea.vmem %s0, 11
    %v113 = vld [vmem:[%s112] sm:$0x1]
    %114 = vrot.lane.b32.xlu0 %v113, 8
    %v115 = vpop.permute.xlu0 %114
    %vm116 = vcmask 261184
    %s117 = scalar_lea.vmem [#allocation0], 16
    %118 = vst.msk [vmem:[%s117] sm:$0x1] %vm116, %v115
    %s120 = sshllo.u32 0, 1
    %v122 = vld [vmem:[#allocation0] sm:%s120]
    %s123 = sshllo.u32 0, 1
    %124 = vst [vmem:[%s1] sm:%s123] %v122
    %s125 = scalar_lea.vmem [#allocation0], 8
    %v126 = vld [vmem:[%s125] sm:%s120]
    %s127 = sshllo.u32 0, 1
    %s128 = scalar_lea.vmem %s1, 1
    %129 = vst [vmem:[%s128] sm:%s127] %v126
    %s130 = scalar_lea.vmem [#allocation0], 16
    %v131 = vld [vmem:[%s130] sm:%s120]
    %s132 = sshllo.u32 0, 1
    %s133 = smul.addr 1, 2
    %s134 = scalar_lea.vmem %s1, %s133
    %135 = vst [vmem:[%s134] sm:%s132] %v131

// kernel: tile.28
$region0: #{tile.28}
  #allocation0 [shape = 's32[1]{0}', space=sflag, size = 0x4, scoped, tag = 'scoped memory for tile.28']
  %s0 = inlined_call_operand.vmem [shape: f32[8], index: 0, kind: input, shape index: {}]
  %s1 = inlined_call_operand.vmem [shape: f32[16,8], index: 1, kind: output, shape index: {}]
  // Predicated region
  $region2: #{tile.28} parent=0 // pred_check
    _
  $region3: #{tile.28} parent=0 // pred_check_branch
    %3 = sbr.rel (0) target = $region5
  $region4: #{tile.28} parent=0 // pred_region
    _
  $region5: #{tile.28} parent=0 // pred_fallthru
    _
  %v4 = vld [vmem:[%s0] ss:$0 sm:$0xff]
  %5 = vst [vmem:[%s1] sm:$0xff] %v4
  %s6 = scalar_lea.vmem %s1, 8
  %7 = vst [vmem:[%s6] sm:$0xff] %v4

// kernel: tile.29
$region0: #{tile.29}
  %s0 = inlined_call_operand.vmem [shape: f32[16,8], index: 0, kind: input, shape index: {}]
  %s1 = inlined_call_operand.vmem [shape: f32[1,128], index: 1, kind: output, shape index: {}]
  $region1: #{tile.29} parent=0
    #allocation0 [shape = 'u8[4096]{0}', space=vmem, size = 0x1000, scoped, tag = 'scoped mem for output reshape']
    %v2 = vld [vmem:[%s0] sm:$0x1]
    %vm3 = vcmask 64512
    %4 = vst.msk [vmem:[#allocation0] sm:$0x1] %vm3, %v2
    %s5 = scalar_lea.vmem %s0, 15
    %v6 = vld [vmem:[%s5] sm:$0x1]
    %7 = vrot.lane.b32.xlu0 %v6, 120
    %v8 = vpop.permute.xlu0 %7
    %vm9 = vcmask 1048512
    %10 = vst.msk [vmem:[#allocation0] sm:$0x1] %vm9, %v8
    %s11 = scalar_lea.vmem %s0, 14
    %v12 = vld [vmem:[%s11] sm:$0x1]
    %13 = vrot.lane.b32.xlu0 %v12, 112
    %v14 = vpop.permute.xlu0 %13
    %vm15 = vcmask 982912
    %16 = vst.msk [vmem:[#allocation0] sm:$0x1] %vm15, %v14
    %s17 = scalar_lea.vmem %s0, 13
    %v18 = vld [vmem:[%s17] sm:$0x1]
    %19 = vrot.lane.b32.xlu0 %v18, 104
    %v20 = vpop.permute.xlu0 %19
    %vm21 = vcmask 917312
    %22 = vst.msk [vmem:[#allocation0] sm:$0x1] %vm21, %v20
    %s23 = scalar_lea.vmem %s0, 12
    %v24 = vld [vmem:[%s23] sm:$0x1]
    %25 = vrot.lane.b32.xlu0 %v24, 96
    %v26 = vpop.permute.xlu0 %25
    %vm27 = vcmask 851712
    %28 = vst.msk [vmem:[#allocation0] sm:$0x1] %vm27, %v26
    %s29 = scalar_lea.vmem %s0, 11
    %v30 = vld [vmem:[%s29] sm:$0x1]
    %31 = vrot.lane.b32.xlu0 %v30, 88
    %v32 = vpop.permute.xlu0 %31
    %vm33 = vcmask 786112
    %34 = vst.msk [vmem:[#allocation0] sm:$0x1] %vm33, %v32
    %s35 = scalar_lea.vmem %s0, 10
    %v36 = vld [vmem:[%s35] sm:$0x1]
    %37 = vrot.lane.b32.xlu0 %v36, 80
    %v38 = vpop.permute.xlu0 %37
    %vm39 = vcmask 720512
    %40 = vst.msk [vmem:[#allocation0] sm:$0x1] %vm39, %v38
    %s41 = scalar_lea.vmem %s0, 9
    %v42 = vld [vmem:[%s41] sm:$0x1]
    %43 = vrot.lane.b32.xlu0 %v42, 72
    %v44 = vpop.permute.xlu0 %43
    %vm45 = vcmask 654912
    %46 = vst.msk [vmem:[#allocation0] sm:$0x1] %vm45, %v44
    %s47 = scalar_lea.vmem %s0, 8
    %v48 = vld [vmem:[%s47] sm:$0x1]
    %49 = vrot.lane.b32.xlu0 %v48, 64
    %v50 = vpop.permute.xlu0 %49
    %vm51 = vcmask 589312
    %52 = vst.msk [vmem:[#allocation0] sm:$0x1] %vm51, %v50
    %s53 = scalar_lea.vmem %s0, 7
    %v54 = vld [vmem:[%s53] sm:$0x1]
    %55 = vrot.lane.b32.xlu0 %v54, 56
    %v56 = vpop.permute.xlu0 %55
    %vm57 = vcmask 523712
    %58 = vst.msk [vmem:[#allocation0] sm:$0x1] %vm57, %v56
    %s59 = scalar_lea.vmem %s0, 6
    %v60 = vld [vmem:[%s59] sm:$0x1]
    %61 = vrot.lane.b32.xlu0 %v60, 48
    %v62 = vpop.permute.xlu0 %61
    %vm63 = vcmask 458112
    %64 = vst.msk [vmem:[#allocation0] sm:$0x1] %vm63, %v62
    %s65 = scalar_lea.vmem %s0, 5
    %v66 = vld [vmem:[%s65] sm:$0x1]
    %67 = vrot.lane.b32.xlu0 %v66, 40
    %v68 = vpop.permute.xlu0 %67
    %vm69 = vcmask 392512
    %70 = vst.msk [vmem:[#allocation0] sm:$0x1] %vm69, %v68
    %s71 = scalar_lea.vmem %s0, 4
    %v72 = vld [vmem:[%s71] sm:$0x1]
    %73 = vrot.lane.b32.xlu0 %v72, 32
    %v74 = vpop.permute.xlu0 %73
    %vm75 = vcmask 326912
    %76 = vst.msk [vmem:[#allocation0] sm:$0x1] %vm75, %v74
    %s77 = scalar_lea.vmem %s0, 3
    %v78 = vld [vmem:[%s77] sm:$0x1]
    %79 = vrot.lane.b32.xlu0 %v78, 24
    %v80 = vpop.permute.xlu0 %79
    %vm81 = vcmask 261312
    %82 = vst.msk [vmem:[#allocation0] sm:$0x1] %vm81, %v80
    %s83 = scalar_lea.vmem %s0, 2
    %v84 = vld [vmem:[%s83] sm:$0x1]
    %85 = vrot.lane.b32.xlu0 %v84, 16
    %v86 = vpop.permute.xlu0 %85
    %vm87 = vcmask 195712
    %88 = vst.msk [vmem:[#allocation0] sm:$0x1] %vm87, %v86
    %s89 = scalar_lea.vmem %s0, 1
    %v90 = vld [vmem:[%s89] sm:$0x1]
    %91 = vrot.lane.b32.xlu0 %v90, 8
    %v92 = vpop.permute.xlu0 %91
    %vm93 = vcmask 130112
    %94 = vst.msk [vmem:[#allocation0] sm:$0x1] %vm93, %v92
    %s96 = sshllo.u32 0, 1
    %v98 = vld [vmem:[#allocation0] sm:%s96]
    %s99 = sshllo.u32 0, 1
    %100 = vst [vmem:[%s1] sm:%s99] %v98

// kernel: inverted_residual_pallas.1
$region0: #{inverted_residual_pallas.1}
  #allocation0 [shape = 'u32[]', space=smem, size = 0x4, offset = 0x4, fixed_abs, tag = 'smem constant byte address 0x4 - core index']
  #allocation1 [shape = 'u32[144,128]{1,0:T(1,128)}', space=vmem, size = 0x12000, scoped, tag = 'internal scratch']
  %s0 = inlined_call_operand.vmem [shape: f32[2,18,144], index: 0, kind: input, shape index: {}]
  %s1 = inlined_call_operand.vmem [shape: f32[144,432], index: 1, kind: input, shape index: {}]
  %s2 = inlined_call_operand.vmem [shape: f32[1,432], index: 2, kind: input, shape index: {}]
  %s3 = inlined_call_operand.vmem [shape: f32[3,3,384], index: 3, kind: input, shape index: {}]
  %s4 = inlined_call_operand.vmem [shape: f32[1,384], index: 4, kind: input, shape index: {}]
  %s5 = inlined_call_operand.vmem [shape: f32[384,128], index: 5, kind: input, shape index: {}]
  %s6 = inlined_call_operand.vmem [shape: f32[1,128], index: 6, kind: input, shape index: {}]
  %s7 = inlined_call_operand.vmem [shape: f32[2,16,128], index: 7, kind: output, shape index: {}]
  %s8 = sld [smem:[#allocation0]]
  $region61: #{inverted_residual_pallas.1} parent=0
    _
  %s10 = ssub.s32 1, %s8
  %s11 = scalar_select 0, %s10, %s8
  loop: start=0, step=1, limit=4
  $region2: #{inverted_residual_pallas.1} parent=0 // loop_pre_header
    _
  $region3: #{inverted_residual_pallas.1} parent=0 // loop_header
    %s13 = sphi 0, %s17
    %p14 = scmp.ge.s32.totalorder %s13, 4
    %s20 = sphi 0, %s32
    %s21 = sphi 0, %s28
    %s22 = sphi 0, %s20
    %s23 = sphi 0, %s21
    %s24 = sphi 0, %s22
    %s25 = sphi 0, %s23
    %s35 = sphi 0, %s37
    %s38 = sphi 0, %s35
    %s39 = sphi 0, %s38
    %s55 = sphi 0, %s39
    %s59 = sphi 0, %s59
    %s61 = sphi 0, %s59
    %s62 = sphi 0, %s61
    %s76 = sphi 0, %s62
    %s80 = sphi 0, %s80
    %s82 = sphi 0, %s80
    %s83 = sphi 0, %s82
    %s97 = sphi 0, %s83
    %s101 = sphi 0, %s101
    %s103 = sphi 0, %s101
    %s104 = sphi 0, %s103
    %s118 = sphi 0, %s104
    %s122 = sphi 0, %s122
    %s124 = sphi 0, %s122
    %s125 = sphi 0, %s124
    %s139 = sphi 0, %s125
    %s143 = sphi 0, %s143
    %s145 = sphi 0, %s143
    %s146 = sphi 0, %s145
    %s160 = sphi 0, %s146
    %s164 = sphi 0, %s164
    %s166 = sphi 0, %s164
    %s167 = sphi 0, %s166
    %s181 = sphi 0, %s167
    %s189 = sphi 0, %s191
    %s192 = sphi 0, %s189
    %s193 = sphi 0, %s192
    %s209 = sphi 0, %s193
  $region4: #{inverted_residual_pallas.1} parent=0 // loop_header_branch
    %16 = sbr.rel (%p14) target = $region8
  $region5: #{inverted_residual_pallas.1} parent=0 // loop_body
    %s18 = ssub.s32 %s13, 1
    %s19 = ssub.s32 %s13, 2
    %s26 = sadd.s32 1, %s21
    %p27 = scmp.ge.s32.totalorder %s26, 1
    %s28 = scalar_select %p27, 0, %s26
    %s29 = sadd.s32 1, %s20
    %s30 = scalar_select %p27, %s29, %s20
    %p31 = scmp.ge.s32.totalorder %s30, 2
    %s32 = scalar_select %p31, 0, %s30
    %s33 = ssub.s32 %s20, %s32
    %p34 = scmp.eq.s32.totalorder %s33, 0
    %s36 = sadd.s32 %s35, 1
    %s37 = scalar_select %p34, %s35, %s36
    %p40 = pneg %p34
    %p41 = scmp.eq.s32.totalorder %s13, 1
    %p42 = por %p40, %p41
    %p43 = scmp.ne.s32.totalorder %s35, %s38
    %p44 = scmp.eq.s32.totalorder %s13, 0
    %p45 = por %p43, %p44
    %p46 = scmp.ne.s32.totalorder %s35, %s38
    %p47 = scmp.eq.s32.totalorder %s18, 1
    %p48 = por %p46, %p47
    %p49 = scmp.ne.s32.totalorder %s38, %s39
    %p50 = scmp.eq.s32.totalorder %s18, 0
    %p51 = por %p49, %p50
    %p52 = scmp.ne.s32.totalorder %s38, %s39
    %p53 = scmp.eq.s32.totalorder %s19, 1
    %p54 = por %p52, %p53
    %p56 = scmp.ne.s32.totalorder %s39, %s55
    %p57 = scmp.eq.s32.totalorder %s19, 0
    %p58 = por %p56, %p57
    %s60 = sadd.s32 %s59, 1
    %p63 = scmp.eq.s32.totalorder %s13, 1
    %p64 = scmp.ne.s32.totalorder %s59, %s61
    %p65 = scmp.eq.s32.totalorder %s13, 0
    %p66 = por %p64, %p65
    %p67 = scmp.ne.s32.totalorder %s59, %s61
    %p68 = scmp.eq.s32.totalorder %s18, 1
    %p69 = por %p67, %p68
    %p70 = scmp.ne.s32.totalorder %s61, %s62
    %p71 = scmp.eq.s32.totalorder %s18, 0
    %p72 = por %p70, %p71
    %p73 = scmp.ne.s32.totalorder %s61, %s62
    %p74 = scmp.eq.s32.totalorder %s19, 1
    %p75 = por %p73, %p74
    %p77 = scmp.ne.s32.totalorder %s62, %s76
    %p78 = scmp.eq.s32.totalorder %s19, 0
    %p79 = por %p77, %p78
    %s81 = sadd.s32 %s80, 1
    %p84 = scmp.eq.s32.totalorder %s13, 1
    %p85 = scmp.ne.s32.totalorder %s80, %s82
    %p86 = scmp.eq.s32.totalorder %s13, 0
    %p87 = por %p85, %p86
    %p88 = scmp.ne.s32.totalorder %s80, %s82
    %p89 = scmp.eq.s32.totalorder %s18, 1
    %p90 = por %p88, %p89
    %p91 = scmp.ne.s32.totalorder %s82, %s83
    %p92 = scmp.eq.s32.totalorder %s18, 0
    %p93 = por %p91, %p92
    %p94 = scmp.ne.s32.totalorder %s82, %s83
    %p95 = scmp.eq.s32.totalorder %s19, 1
    %p96 = por %p94, %p95
    %p98 = scmp.ne.s32.totalorder %s83, %s97
    %p99 = scmp.eq.s32.totalorder %s19, 0
    %p100 = por %p98, %p99
    %s102 = sadd.s32 %s101, 1
    %p105 = scmp.eq.s32.totalorder %s13, 1
    %p106 = scmp.ne.s32.totalorder %s101, %s103
    %p107 = scmp.eq.s32.totalorder %s13, 0
    %p108 = por %p106, %p107
    %p109 = scmp.ne.s32.totalorder %s101, %s103
    %p110 = scmp.eq.s32.totalorder %s18, 1
    %p111 = por %p109, %p110
    %p112 = scmp.ne.s32.totalorder %s103, %s104
    %p113 = scmp.eq.s32.totalorder %s18, 0
    %p114 = por %p112, %p113
    %p115 = scmp.ne.s32.totalorder %s103, %s104
    %p116 = scmp.eq.s32.totalorder %s19, 1
    %p117 = por %p115, %p116
    %p119 = scmp.ne.s32.totalorder %s104, %s118
    %p120 = scmp.eq.s32.totalorder %s19, 0
    %p121 = por %p119, %p120
    %s123 = sadd.s32 %s122, 1
    %p126 = scmp.eq.s32.totalorder %s13, 1
    %p127 = scmp.ne.s32.totalorder %s122, %s124
    %p128 = scmp.eq.s32.totalorder %s13, 0
    %p129 = por %p127, %p128
    %p130 = scmp.ne.s32.totalorder %s122, %s124
    %p131 = scmp.eq.s32.totalorder %s18, 1
    %p132 = por %p130, %p131
    %p133 = scmp.ne.s32.totalorder %s124, %s125
    %p134 = scmp.eq.s32.totalorder %s18, 0
    %p135 = por %p133, %p134
    %p136 = scmp.ne.s32.totalorder %s124, %s125
    %p137 = scmp.eq.s32.totalorder %s19, 1
    %p138 = por %p136, %p137
    %p140 = scmp.ne.s32.totalorder %s125, %s139
    %p141 = scmp.eq.s32.totalorder %s19, 0
    %p142 = por %p140, %p141
    %s144 = sadd.s32 %s143, 1
    %p147 = scmp.eq.s32.totalorder %s13, 1
    %p148 = scmp.ne.s32.totalorder %s143, %s145
    %p149 = scmp.eq.s32.totalorder %s13, 0
    %p150 = por %p148, %p149
    %p151 = scmp.ne.s32.totalorder %s143, %s145
    %p152 = scmp.eq.s32.totalorder %s18, 1
    %p153 = por %p151, %p152
    %p154 = scmp.ne.s32.totalorder %s145, %s146
    %p155 = scmp.eq.s32.totalorder %s18, 0
    %p156 = por %p154, %p155
    %p157 = scmp.ne.s32.totalorder %s145, %s146
    %p158 = scmp.eq.s32.totalorder %s19, 1
    %p159 = por %p157, %p158
    %p161 = scmp.ne.s32.totalorder %s146, %s160
    %p162 = scmp.eq.s32.totalorder %s19, 0
    %p163 = por %p161, %p162
    %s165 = sadd.s32 %s164, 1
    %p168 = scmp.eq.s32.totalorder %s13, 1
    %p169 = scmp.ne.s32.totalorder %s164, %s166
    %p170 = scmp.eq.s32.totalorder %s13, 0
    %p171 = por %p169, %p170
    %p172 = scmp.ne.s32.totalorder %s164, %s166
    %p173 = scmp.eq.s32.totalorder %s18, 1
    %p174 = por %p172, %p173
    %p175 = scmp.ne.s32.totalorder %s166, %s167
    %p176 = scmp.eq.s32.totalorder %s18, 0
    %p177 = por %p175, %p176
    %p178 = scmp.ne.s32.totalorder %s166, %s167
    %p179 = scmp.eq.s32.totalorder %s19, 1
    %p180 = por %p178, %p179
    %p182 = scmp.ne.s32.totalorder %s167, %s181
    %p183 = scmp.eq.s32.totalorder %s19, 0
    %p184 = por %p182, %p183
    %s185 = ssub.s32 %s20, %s32
    %s186 = ssub.s32 %s21, %s28
    %s187 = sor.u32 %s185, %s186
    %p188 = scmp.eq.s32.totalorder %s187, 0
    %s190 = sadd.s32 %s189, 1
    %s191 = scalar_select %p188, %s189, %s190
    %p194 = pneg %p188
    %p195 = scmp.eq.s32.totalorder %s13, 1
    %p196 = por %p194, %p195
    %p197 = scmp.ne.s32.totalorder %s189, %s192
    %p198 = scmp.eq.s32.totalorder %s13, 0
    %p199 = por %p197, %p198
    %p200 = scmp.ne.s32.totalorder %s189, %s192
    %p201 = scmp.eq.s32.totalorder %s18, 1
    %p202 = por %p200, %p201
    %p203 = scmp.ne.s32.totalorder %s192, %s193
    %p204 = scmp.eq.s32.totalorder %s18, 0
    %p205 = por %p203, %p204
    %p206 = scmp.ne.s32.totalorder %s192, %s193
    %p207 = scmp.eq.s32.totalorder %s19, 1
    %p208 = por %p206, %p207
    %p210 = scmp.ne.s32.totalorder %s193, %s209
    %p211 = scmp.eq.s32.totalorder %s19, 0
    %p212 = por %p210, %p211
    %p213 = scmp.le.s32.totalorder 1, %s13
    %p214 = scmp.lt.s32.totalorder %s13, 3
    %p215 = pnand %p213, %p214
    %p216 = pneg %p215
    // Predicated region
    $region9: #{inverted_residual_pallas.1} parent=5 // pred_check
      _
    $region10: #{inverted_residual_pallas.1} parent=5 // pred_check_branch
      %218 = sbr.rel (%p215) target = $region12
    $region11: #{inverted_residual_pallas.1} parent=5 // pred_region
      %s219 = ssub.s32 %s13, 1
      // Predicated region
      $region13: #{inverted_residual_pallas.1} parent=11 // pred_check
        %p220 = pneg %p72
      $region14: #{inverted_residual_pallas.1} parent=11 // pred_check_branch
        %222 = sbr.rel (%p220) target = $region16
      $region15: #{inverted_residual_pallas.1} parent=11 // pred_region
        _
      $region16: #{inverted_residual_pallas.1} parent=11 // pred_fallthru
        _
      // Predicated region
      $region17: #{inverted_residual_pallas.1} parent=11 // pred_check
        %p223 = pneg %p93
      $region18: #{inverted_residual_pallas.1} parent=11 // pred_check_branch
        %225 = sbr.rel (%p223) target = $region20
      $region19: #{inverted_residual_pallas.1} parent=11 // pred_region
        _
      $region20: #{inverted_residual_pallas.1} parent=11 // pred_fallthru
        _
      // Predicated region
      $region21: #{inverted_residual_pallas.1} parent=11 // pred_check
        %p226 = pneg %p114
      $region22: #{inverted_residual_pallas.1} parent=11 // pred_check_branch
        %228 = sbr.rel (%p226) target = $region24
      $region23: #{inverted_residual_pallas.1} parent=11 // pred_region
        _
      $region24: #{inverted_residual_pallas.1} parent=11 // pred_fallthru
        _
      // Predicated region
      $region25: #{inverted_residual_pallas.1} parent=11 // pred_check
        %p229 = pneg %p135
      $region26: #{inverted_residual_pallas.1} parent=11 // pred_check_branch
        %231 = sbr.rel (%p229) target = $region28
      $region27: #{inverted_residual_pallas.1} parent=11 // pred_region
        _
      $region28: #{inverted_residual_pallas.1} parent=11 // pred_fallthru
        _
      // Predicated region
      $region29: #{inverted_residual_pallas.1} parent=11 // pred_check
        %p232 = pneg %p156
      $region30: #{inverted_residual_pallas.1} parent=11 // pred_check_branch
        %234 = sbr.rel (%p232) target = $region32
      $region31: #{inverted_residual_pallas.1} parent=11 // pred_region
        _
      $region32: #{inverted_residual_pallas.1} parent=11 // pred_fallthru
        _
      // Predicated region
      $region33: #{inverted_residual_pallas.1} parent=11 // pred_check
        %p235 = pneg %p177
      $region34: #{inverted_residual_pallas.1} parent=11 // pred_check_branch
        %237 = sbr.rel (%p235) target = $region36
      $region35: #{inverted_residual_pallas.1} parent=11 // pred_region
        _
      $region36: #{inverted_residual_pallas.1} parent=11 // pred_fallthru
        _
    $region12: #{inverted_residual_pallas.1} parent=5 // pred_fallthru
      _
    %p238 = scmp.lt.s32.totalorder %s13, 2
    // Predicated region
    $region37: #{inverted_residual_pallas.1} parent=5 // pred_check
      %p239 = pneg %p238
    $region38: #{inverted_residual_pallas.1} parent=5 // pred_check_branch
      %241 = sbr.rel (%p239) target = $region40
    $region39: #{inverted_residual_pallas.1} parent=5 // pred_region
      // Predicated region
      $region41: #{inverted_residual_pallas.1} parent=39 // pred_check
        %p242 = pneg %p45
      $region42: #{inverted_residual_pallas.1} parent=39 // pred_check_branch
        %244 = sbr.rel (%p242) target = $region44
      $region43: #{inverted_residual_pallas.1} parent=39 // pred_region
        %p245 = scmp.lt.s32.totalorder %s20, 1
        %s246 = scalar_select %p245, %s20, 1
        %s247 = smul.addr %s246, 6
        %s248 = smul.addr %s247, 8
        %s249 = scalar_lea.vmem %s0, %s248
      $region44: #{inverted_residual_pallas.1} parent=39 // pred_fallthru
        _
    $region40: #{inverted_residual_pallas.1} parent=5 // pred_fallthru
      _
    %p250 = scmp.le.s32.totalorder 1, %s13
    %p251 = scmp.lt.s32.totalorder %s13, 3
    %p252 = pnand %p250, %p251
    %p253 = pneg %p252
    // Predicated region
    $region45: #{inverted_residual_pallas.1} parent=5 // pred_check
      _
    $region46: #{inverted_residual_pallas.1} parent=5 // pred_check_branch
      %255 = sbr.rel (%p252) target = $region48
    $region47: #{inverted_residual_pallas.1} parent=5 // pred_region
      %s256 = ssub.s32 %s13, 1
      %p257 = scmp.lt.s32.totalorder %s22, 1
      %s258 = scalar_select %p257, %s22, 1
      %s259 = smul.addr %s258, 6
      %s260 = smul.addr %s259, 8
      %s261 = scalar_lea.vmem %s0, %s260
      %p262 = pneg %p51
      %p263 = pneg %p48
      %p264 = pneg %p72
      %p265 = pneg %p69
      %p266 = pneg %p93
      %p267 = pneg %p90
      %p268 = pneg %p114
      %p269 = pneg %p111
      %p270 = pneg %p135
      %p271 = pneg %p132
      %p272 = pneg %p156
      %p273 = pneg %p153
      %p274 = pneg %p177
      %p275 = pneg %p174
      %p276 = pneg %p205
      %p277 = pneg %p202
      %s278 = smul.u32 2, %s23
      %p279 = scmp.lt.s32.totalorder %s22, 1
      %s280 = scalar_select %p279, %s22, 1
      %p281 = scmp.lt.s32.totalorder %s278, 1
      %s282 = scalar_select %p281, %s278, 1
      %s283 = smul.addr %s280, 2
      %s284 = sadd.s32 %s282, %s283
      %s285 = smul.addr %s284, 8
      %s286 = scalar_lea.vmem %s7, %s285
      %p287 = scmp.lt.s32.totalorder %s22, 1
      %s288 = scalar_select %p287, %s22, 1
      %s289 = smul.addr %s288, 6
      %s290 = smul.addr %s289, 8
      %s291 = scalar_lea.vmem %s0, %s290
      %s292 = smul.u32 2, %s23
      %p293 = scmp.lt.s32.totalorder %s22, 1
      %s294 = scalar_select %p293, %s22, 1
      %p295 = scmp.lt.s32.totalorder %s292, 1
      %s296 = scalar_select %p295, %s292, 1
      %s297 = smul.addr %s294, 2
      %s298 = sadd.s32 %s296, %s297
      %s299 = smul.addr %s298, 8
      %s300 = scalar_lea.vmem %s7, %s299
      %s301 = smul.u32 2, %s23
      %s302 = smul.u32 %s23, 16
      %s303 = sshra.s32 %s302, 3
      %s304 = sand.u32 %s302, 7
      %s305 = smul.u32 %s303, 2
      %s306 = smul.addr %s305, 8
      %s307 = scalar_lea.vmem %s291, %s306
      %v308 = vld [vmem:[%s307] sm:$0xff]
      %v309 = vld [vmem:[%s307 + $0x8] sm:$0xff]
      %v310 = vld [vmem:[%s307 + $0x10] sm:$0xff]
      %v311 = vld [vmem:[%s307 + $0x18] sm:$0xff]
      %v312 = vld [vmem:[%s307 + $0x20] sm:$0x3]
      %v313 = vld [vmem:[%s307 + $0x28] sm:$0x3]
      %v314 = vld [vmem:[%s1] sm:$0xff]
      %v315 = vld [vmem:[%s1 + $0x8] sm:$0xff]
      %v316 = vld [vmem:[%s1 + $0x10] sm:$0xff]
      %v317 = vld [vmem:[%s1 + $0x18] sm:$0xff]
      %v318 = vld [vmem:[%s1 + $0x20] sm:$0xff]
      %v319 = vld [vmem:[%s1 + $0x28] sm:$0xff]
      %v320 = vld [vmem:[%s1 + $0x30] sm:$0xff]
      %v321 = vld [vmem:[%s1 + $0x38] sm:$0xff]
      %v322 = vld [vmem:[%s1 + $0x40] sm:$0xff]
      %v323 = vld [vmem:[%s1 + $0x48] sm:$0xff]
      %v324 = vld [vmem:[%s1 + $0x50] sm:$0xff]
      %v325 = vld [vmem:[%s1 + $0x58] sm:$0xff]
      %v326 = vld [vmem:[%s1 + $0x60] sm:$0xff]
      %v327 = vld [vmem:[%s1 + $0x68] sm:$0xff]
      %v328 = vld [vmem:[%s1 + $0x70] sm:$0xff]
      %v329 = vld [vmem:[%s1 + $0x78] sm:$0xff]
      %v330 = vld [vmem:[%s1 + $0x80] sm:$0xff]
      %v331 = vld [vmem:[%s1 + $0x88] sm:$0xff]
      %v332 = vld [vmem:[%s1 + $0x90] sm:$0xff]
      %v333 = vld [vmem:[%s1 + $0x98] sm:$0xff]
      %v334 = vld [vmem:[%s1 + $0xa0] sm:$0xff]
      %v335 = vld [vmem:[%s1 + $0xa8] sm:$0xff]
      %v336 = vld [vmem:[%s1 + $0xb0] sm:$0xff]
      %v337 = vld [vmem:[%s1 + $0xb8] sm:$0xff]
      %v338 = vld [vmem:[%s1 + $0xc0] sm:$0xff]
      %v339 = vld [vmem:[%s1 + $0xc8] sm:$0xff]
      %v340 = vld [vmem:[%s1 + $0xd0] sm:$0xff]
      %v341 = vld [vmem:[%s1 + $0xd8] sm:$0xff]
      %v342 = vld [vmem:[%s1 + $0xe0] sm:$0xff]
      %v343 = vld [vmem:[%s1 + $0xe8] sm:$0xff]
      %v344 = vld [vmem:[%s1 + $0xf0] sm:$0xff]
      %v345 = vld [vmem:[%s1 + $0xf8] sm:$0xff]
      %v346 = vld [vmem:[%s1 + $0x100] sm:$0xff]
      %v347 = vld [vmem:[%s1 + $0x108] sm:$0xff]
      %v348 = vld [vmem:[%s1 + $0x110] sm:$0xff]
      %v349 = vld [vmem:[%s1 + $0x118] sm:$0xff]
      %v350 = vld [vmem:[%s1 + $0x120] sm:$0xff]
      %v351 = vld [vmem:[%s1 + $0x128] sm:$0xff]
      %v352 = vld [vmem:[%s1 + $0x130] sm:$0xff]
      %v353 = vld [vmem:[%s1 + $0x138] sm:$0xff]
      %v354 = vld [vmem:[%s1 + $0x140] sm:$0xff]
      %v355 = vld [vmem:[%s1 + $0x148] sm:$0xff]
      %v356 = vld [vmem:[%s1 + $0x150] sm:$0xff]
      %v357 = vld [vmem:[%s1 + $0x158] sm:$0xff]
      %v358 = vld [vmem:[%s1 + $0x160] sm:$0xff]
      %v359 = vld [vmem:[%s1 + $0x168] sm:$0xff]
      %v360 = vld [vmem:[%s1 + $0x170] sm:$0xff]
      %v361 = vld [vmem:[%s1 + $0x178] sm:$0xff]
      %v362 = vld [vmem:[%s1 + $0x180] sm:$0xff]
      %v363 = vld [vmem:[%s1 + $0x188] sm:$0xff]
      %v364 = vld [vmem:[%s1 + $0x190] sm:$0xff]
      %v365 = vld [vmem:[%s1 + $0x198] sm:$0xff]
      %v366 = vld [vmem:[%s1 + $0x1a0] sm:$0xff]
      %v367 = vld [vmem:[%s1 + $0x1a8] sm:$0xff]
      %v368 = vld [vmem:[%s1 + $0x1b0] sm:$0xff]
      %v369 = vld [vmem:[%s1 + $0x1b8] sm:$0xff]
      %v370 = vld [vmem:[%s1 + $0x1c0] sm:$0xff]
      %v371 = vld [vmem:[%s1 + $0x1c8] sm:$0xff]
      %v372 = vld [vmem:[%s1 + $0x1d0] sm:$0xff]
      %v373 = vld [vmem:[%s1 + $0x1d8] sm:$0xff]
      %v374 = vld [vmem:[%s1 + $0x1e0] sm:$0xff]
      %v375 = vld [vmem:[%s1 + $0x1e8] sm:$0xff]
      %v376 = vld [vmem:[%s1 + $0x1f0] sm:$0xff]
      %v377 = vld [vmem:[%s1 + $0x1f8] sm:$0xff]
      %v378 = vld [vmem:[%s1 + $0x200] sm:$0xff]
      %v379 = vld [vmem:[%s1 + $0x208] sm:$0xff]
      %v380 = vld [vmem:[%s1 + $0x210] sm:$0xff]
      %v381 = vld [vmem:[%s1 + $0x218] sm:$0xff]
      %v382 = vld [vmem:[%s1 + $0x220] sm:$0xff]
      %v383 = vld [vmem:[%s1 + $0x228] sm:$0xff]
      %v384 = vld [vmem:[%s1 + $0x230] sm:$0xff]
      %v385 = vld [vmem:[%s1 + $0x238] sm:$0xff]
      %v386 = vld [vmem:[%s2] sm:$0xf]
      %v388 = vlaneseq
      %v389 = vshrl.u32 %v388, 7
      %v390 = vsub.s32 0, %v389
      %v391 = vrot.slane %v386, %v390
      %v392 = vlaneseq
      %v393 = vshrl.u32 %v392, 7
      %v394 = vsub.s32 1, %v393
      %v395 = vrot.slane %v386, %v394
      %v396 = vlaneseq
      %v397 = vshrl.u32 %v396, 7
      %v398 = vsub.s32 2, %v397
      %v399 = vrot.slane %v386, %v398
      %v400 = vlaneseq
      %v401 = vshrl.u32 %v400, 7
      %v402 = vsub.s32 3, %v401
      %v403 = vrot.slane %v386, %v402
      %vm408 = vcmask 130048
      %v410 = vsel %vm408, %v309, 0
      %v413 = vsel %vm408, %v311, 0
      %v416 = vsel %vm408, %v313, 0
      %418 = vmatprep.subr.mxu0 %v315
      %419 = vmatpush1.msra.mxu0 %v314
      %420 = vmatprep.subr.mxu0 %v319
      %421 = vmatpush1.msra.mxu0 %v318
      %422 = vmatprep.subr.mxu0 %v323
      %423 = vmatpush1.msra.mxu0 %v322
      %424 = vmatprep.subr.mxu0 %v327
      %425 = vmatpush1.msra.mxu0 %v326
      %426 = vmatprep.subr.mxu0 %v331
      %427 = vmatpush1.msra.mxu0 %v330
      %428 = vmatprep.subr.mxu0 %v335
      %429 = vmatpush1.msra.mxu0 %v334
      %430 = vmatprep.subr.mxu0 %v339
      %431 = vmatpush1.msra.mxu0 %v338
      %432 = vmatprep.subr.mxu0 %v343
      %433 = vmatpush1.msra.mxu0 %v342
      %434 = vmatprep.subr.mxu0 %v347
      %435 = vmatpush1.msra.mxu0 %v346
      %436 = vmatprep.subr.mxu0 %v351
      %437 = vmatpush1.msra.mxu0 %v350
      %438 = vmatprep.subr.mxu0 %v355
      %439 = vmatpush1.msra.mxu0 %v354
      %440 = vmatprep.subr.mxu0 %v359
      %441 = vmatpush1.msra.mxu0 %v358
      %442 = vmatprep.subr.mxu0 %v363
      %443 = vmatpush1.msra.mxu0 %v362
      %444 = vmatprep.subr.mxu0 %v367
      %445 = vmatpush1.msra.mxu0 %v366
      %446 = vmatprep.subr.mxu0 %v371
      %447 = vmatpush1.msra.mxu0 %v370
      %448 = vmatprep.subr.mxu0 %v375
      %449 = vmatpush1.msra.mxu0 %v374
      %450 = vmatprep.subr.mxu0 %v379
      %451 = vmatpush1.msra.mxu0 %v378
      %452 = vmatprep.subr.mxu0 %v383
      %453 = vmatpush1.msra.mxu0 %v382
      %454 = vmatprep.subr.mxu0 0.0
      %455 = vmatpush1.msra.mxu0 0.0
      %456 = vmatprep.subr.mxu0 0.0
      %457 = vmatpush1.msra.mxu0 0.0
      %458 = vmatprep.subr.mxu0 0.0
      %459 = vmatpush1.msra.mxu0 0.0
      %460 = vmatprep.subr.mxu0 0.0
      %461 = vmatpush1.msra.mxu0 0.0
      %462 = vmatprep.subr.mxu0 0.0
      %463 = vmatpush1.msra.mxu0 0.0
      %464 = vmatprep.subr.mxu0 0.0
      %465 = vmatpush1.msra.mxu0 0.0
      %466 = vmatprep.subr.mxu0 0.0
      %467 = vmatpush1.msra.mxu0 0.0
      %468 = vmatprep.subr.mxu0 0.0
      %469 = vmatpush1.msra.mxu0 0.0
      %470 = vmatprep.subr.mxu0 0.0
      %471 = vmatpush1.msra.mxu0 0.0
      %472 = vmatprep.subr.mxu0 0.0
      %473 = vmatpush1.msra.mxu0 0.0
      %474 = vmatprep.subr.mxu0 0.0
      %475 = vmatpush1.msra.mxu0 0.0
      %476 = vmatprep.subr.mxu0 0.0
      %477 = vmatpush1.msra.mxu0 0.0
      %478 = vmatprep.subr.mxu0 0.0
      %479 = vmatpush1.msra.mxu0 0.0
      %480 = vmatprep.subr.mxu0 0.0
      %481 = vmatpush1.msra.mxu0 0.0
      %482 = vmatprep.mubr.f32.mxu0 %v410
      %483 = vmatmul.mubr.f32.gmra.mrb[0].mxu0 %v308
      %v484 = vpop.f32.mrb[0].mxu0
      %v485 = vadd.f32 %v391, %v484
      %v486 = vpop.f32.mrb[0].mxu0
      %v487 = vadd.f32 %v395, %v486
      %488 = vmatprep.mubr.f32.mxu0 %v413
      %489 = vmatmul.mubr.f32.gmra.mrb[0].mxu0 %v310
      %v490 = vpop.f32.mrb[0].mxu0
      %v491 = vadd.f32 %v391, %v490
      %v492 = vpop.f32.mrb[0].mxu0
      %v493 = vadd.f32 %v395, %v492
      %494 = vmatprep.mubr.f32.mxu0 %v416
      %495 = vmatmul.mubr.f32.gmra.mrb[0].mxu0 %v312
      %v496 = vpop.f32.mrb[0].mxu0
      %v497 = vadd.f32 %v391, %v496
      %v498 = vpop.f32.mrb[0].mxu0
      %v499 = vadd.f32 %v395, %v498
      %500 = vdwg.mxu0
      %501 = vmatprep.subr.mxu0 %v317
      %502 = vmatpush1.msra.mxu0 %v316
      %503 = vmatprep.subr.mxu0 %v321
      %504 = vmatpush1.msra.mxu0 %v320
      %505 = vmatprep.subr.mxu0 %v325
      %506 = vmatpush1.msra.mxu0 %v324
      %507 = vmatprep.subr.mxu0 %v329
      %508 = vmatpush1.msra.mxu0 %v328
      %509 = vmatprep.subr.mxu0 %v333
      %510 = vmatpush1.msra.mxu0 %v332
      %511 = vmatprep.subr.mxu0 %v337
      %512 = vmatpush1.msra.mxu0 %v336
      %513 = vmatprep.subr.mxu0 %v341
      %514 = vmatpush1.msra.mxu0 %v340
      %515 = vmatprep.subr.mxu0 %v345
      %516 = vmatpush1.msra.mxu0 %v344
      %517 = vmatprep.subr.mxu0 %v349
      %518 = vmatpush1.msra.mxu0 %v348
      %519 = vmatprep.subr.mxu0 %v353
      %520 = vmatpush1.msra.mxu0 %v352
      %521 = vmatprep.subr.mxu0 %v357
      %522 = vmatpush1.msra.mxu0 %v356
      %523 = vmatprep.subr.mxu0 %v361
      %524 = vmatpush1.msra.mxu0 %v360
      %525 = vmatprep.subr.mxu0 %v365
      %526 = vmatpush1.msra.mxu0 %v364
      %527 = vmatprep.subr.mxu0 %v369
      %528 = vmatpush1.msra.mxu0 %v368
      %529 = vmatprep.subr.mxu0 %v373
      %530 = vmatpush1.msra.mxu0 %v372
      %531 = vmatprep.subr.mxu0 %v377
      %532 = vmatpush1.msra.mxu0 %v376
      %533 = vmatprep.subr.mxu0 %v381
      %534 = vmatpush1.msra.mxu0 %v380
      %535 = vmatprep.subr.mxu0 %v385
      %536 = vmatpush1.msra.mxu0 %v384
      %537 = vmatprep.subr.mxu0 0.0
      %538 = vmatpush1.msra.mxu0 0.0
      %539 = vmatprep.subr.mxu0 0.0
      %540 = vmatpush1.msra.mxu0 0.0
      %541 = vmatprep.subr.mxu0 0.0
      %542 = vmatpush1.msra.mxu0 0.0
      %543 = vmatprep.subr.mxu0 0.0
      %544 = vmatpush1.msra.mxu0 0.0
      %545 = vmatprep.subr.mxu0 0.0
      %546 = vmatpush1.msra.mxu0 0.0
      %547 = vmatprep.subr.mxu0 0.0
      %548 = vmatpush1.msra.mxu0 0.0
      %549 = vmatprep.subr.mxu0 0.0
      %550 = vmatpush1.msra.mxu0 0.0
      %551 = vmatprep.subr.mxu0 0.0
      %552 = vmatpush1.msra.mxu0 0.0
      %553 = vmatprep.subr.mxu0 0.0
      %554 = vmatpush1.msra.mxu0 0.0
      %555 = vmatprep.subr.mxu0 0.0
      %556 = vmatpush1.msra.mxu0 0.0
      %557 = vmatprep.subr.mxu0 0.0
      %558 = vmatpush1.msra.mxu0 0.0
      %559 = vmatprep.subr.mxu0 0.0
      %560 = vmatpush1.msra.mxu0 0.0
      %561 = vmatprep.subr.mxu0 0.0
      %562 = vmatpush1.msra.mxu0 0.0
      %563 = vmatprep.subr.mxu0 0.0
      %564 = vmatpush1.msra.mxu0 0.0
      %565 = vmatprep.mubr.f32.mxu0 %v410
      %566 = vmatmul.mubr.f32.gmra.mrb[0].mxu0 %v308
      %v567 = vpop.f32.mrb[0].mxu0
      %v568 = vadd.f32 %v399, %v567
      %v569 = vpop.f32.mrb[0].mxu0
      %v570 = vadd.f32 %v403, %v569
      %571 = vmatprep.mubr.f32.mxu0 %v413
      %572 = vmatmul.mubr.f32.gmra.mrb[0].mxu0 %v310
      %v573 = vpop.f32.mrb[0].mxu0
      %v574 = vadd.f32 %v399, %v573
      %v575 = vpop.f32.mrb[0].mxu0
      %v576 = vadd.f32 %v403, %v575
      %577 = vmatprep.mubr.f32.mxu0 %v416
      %578 = vmatmul.mubr.f32.gmra.mrb[0].mxu0 %v312
      %v579 = vpop.f32.mrb[0].mxu0
      %v580 = vadd.f32 %v399, %v579
      %v581 = vpop.f32.mrb[0].mxu0
      %v582 = vadd.f32 %v403, %v581
      %583 = vdwg.mxu0
      %v584 = vmax.f32 %v485, 0.0
      %v585 = vmax.f32 %v487, 0.0
      %v586 = vmax.f32 %v568, 0.0
      %v587 = vmax.f32 %v570, 0.0
      %v588 = vmax.f32 %v491, 0.0
      %v589 = vmax.f32 %v493, 0.0
      %v590 = vmax.f32 %v574, 0.0
      %v591 = vmax.f32 %v576, 0.0
      %v592 = vmax.f32 %v497, 0.0
      %v593 = vmax.f32 %v499, 0.0
      %v594 = vmax.f32 %v580, 0.0
      %v595 = vmax.f32 %v582, 0.0
      %v596 = vlaneseq
      %v597 = vshrl.u32 %v596, 7
      %v598 = vadd.s32 %v597, 8
      %v599 = vadd.s32 %v597, 16
      %v600 = vstv %s302
      %v601 = vadd.s32 %v600, %v597
      %v602 = vadd.s32 %v600, %v598
      %v603 = vadd.s32 %v600, %v599
      %vm604 = vcmp.ge.s32.totalorder %v601, 1
      %vm605 = vcmp.ge.s32.totalorder %v602, 1
      %vm606 = vcmp.ge.s32.totalorder %v603, 1
      %vm607 = vcmp.lt.s32.totalorder %v601, 17
      %vm608 = vcmp.lt.s32.totalorder %v602, 17
      %vm609 = vcmp.lt.s32.totalorder %v603, 17
      %vm610 = vmand %vm604, %vm607
      %vm611 = vmand %vm605, %vm608
      %vm612 = vmand %vm606, %vm609
      %v613 = vsel %vm610, 1, 0
      %v614 = vsel %vm611, 1, 0
      %v615 = vsel %vm612, 1, 0
      %vm616 = vcmp.eq.s32.totalorder %v613, 1
      %vm617 = vcmp.eq.s32.totalorder %v614, 1
      %vm618 = vcmp.eq.s32.totalorder %v615, 1
      %v619 = vsel %vm616, %v584, 0.0
      %v620 = vsel %vm616, %v585, 0.0
      %v621 = vsel %vm616, %v586, 0.0
      %v622 = vsel %vm616, %v587, 0.0
      %v623 = vsel %vm617, %v588, 0.0
      %v624 = vsel %vm617, %v589, 0.0
      %v625 = vsel %vm617, %v590, 0.0
      %v626 = vsel %vm617, %v591, 0.0
      %v627 = vsel %vm618, %v592, 0.0
      %v628 = vsel %vm618, %v593, 0.0
      %v629 = vsel %vm618, %v594, 0.0
      %v630 = vsel %vm618, %v595, 0.0
      %v631 = vld [vmem:[%s3] ss:$4 sm:$0x7]
      %v633 = vlaneseq
      %v634 = vshrl.u32 %v633, 7
      %v635 = vsub.s32 0, %v634
      %v636 = vrot.slane %v631, %v635
      %v637 = vlaneseq
      %v638 = vshrl.u32 %v637, 7
      %v639 = vsub.s32 1, %v638
      %v640 = vrot.slane %v631, %v639
      %v641 = vlaneseq
      %v642 = vshrl.u32 %v641, 7
      %v643 = vsub.s32 2, %v642
      %v644 = vrot.slane %v631, %v643
      %v648 = vmul.f32 %v619, %v636
      %v649 = vmul.f32 %v620, %v640
      %v650 = vmul.f32 %v621, %v644
      %v651 = vmul.f32 %v623, %v636
      %v652 = vmul.f32 %v624, %v640
      %v653 = vmul.f32 %v625, %v644
      %v654 = vadd.f32 %v648, 0.0
      %v655 = vadd.f32 %v649, 0.0
      %v656 = vadd.f32 %v650, 0.0
      %v657 = vadd.f32 %v651, 0.0
      %v658 = vadd.f32 %v652, 0.0
      %v659 = vadd.f32 %v653, 0.0
      %s660 = scalar_lea.vmem %s3, 1
      %v661 = vld [vmem:[%s660] ss:$4 sm:$0x7]
      %v663 = vlaneseq
      %v664 = vshrl.u32 %v663, 7
      %v665 = vsub.s32 0, %v664
      %v666 = vrot.slane %v661, %v665
      %v667 = vlaneseq
      %v668 = vshrl.u32 %v667, 7
      %v669 = vsub.s32 1, %v668
      %v670 = vrot.slane %v661, %v669
      %v671 = vlaneseq
      %v672 = vshrl.u32 %v671, 7
      %v673 = vsub.s32 2, %v672
      %v674 = vrot.slane %v661, %v673
      %675 = vrot.lane.b32.xlu0 %v666, 24
      %v676 = vpop.permute.xlu0 %675
      %677 = vrot.lane.b32.xlu0 %v670, 24
      %v678 = vpop.permute.xlu0 %677
      %679 = vrot.lane.b32.xlu0 %v674, 24
      %v680 = vpop.permute.xlu0 %679
      %vm681 = vcmask 195584
      %v682 = vsel %vm681, %v676, %v678
      %v683 = vsel %vm681, %v678, %v680
      %v688 = vmul.f32 %v619, %v676
      %v689 = vmul.f32 %v620, %v682
      %v690 = vmul.f32 %v621, %v683
      %v691 = vmul.f32 %v622, %v680
      %v692 = vmul.f32 %v623, %v676
      %v693 = vmul.f32 %v624, %v682
      %v694 = vmul.f32 %v625, %v683
      %v695 = vmul.f32 %v626, %v680
      %704 = vrot.lane.b32.xlu0 %v688, 104
      %v705 = vpop.permute.xlu0 %704
      %706 = vrot.lane.b32.xlu0 %v689, 104
      %v707 = vpop.permute.xlu0 %706
      %708 = vrot.lane.b32.xlu0 %v690, 104
      %v709 = vpop.permute.xlu0 %708
      %710 = vrot.lane.b32.xlu0 %v691, 104
      %v711 = vpop.permute.xlu0 %710
      %712 = vrot.lane.b32.xlu0 %v692, 104
      %v713 = vpop.permute.xlu0 %712
      %714 = vrot.lane.b32.xlu0 %v693, 104
      %v715 = vpop.permute.xlu0 %714
      %716 = vrot.lane.b32.xlu0 %v694, 104
      %v717 = vpop.permute.xlu0 %716
      %718 = vrot.lane.b32.xlu0 %v695, 104
      %v719 = vpop.permute.xlu0 %718
      %vm720 = vcmask 850944
      %v721 = vsel %vm720, %v705, %v707
      %v722 = vsel %vm720, %v707, %v709
      %v723 = vsel %vm720, %v709, %v711
      %v724 = vsel %vm720, %v713, %v715
      %v725 = vsel %vm720, %v715, %v717
      %v726 = vsel %vm720, %v717, %v719
      %v733 = vadd.f32 %v654, %v721
      %v734 = vadd.f32 %v655, %v722
      %v735 = vadd.f32 %v656, %v723
      %v736 = vadd.f32 %v657, %v724
      %v737 = vadd.f32 %v658, %v725
      %v738 = vadd.f32 %v659, %v726
      %s739 = scalar_lea.vmem %s3, 2
      %v740 = vld [vmem:[%s739] ss:$4 sm:$0x7]
      %v742 = vlaneseq
      %v743 = vshrl.u32 %v742, 7
      %v744 = vsub.s32 0, %v743
      %v745 = vrot.slane %v740, %v744
      %v746 = vlaneseq
      %v747 = vshrl.u32 %v746, 7
      %v748 = vsub.s32 1, %v747
      %v749 = vrot.slane %v740, %v748
      %v750 = vlaneseq
      %v751 = vshrl.u32 %v750, 7
      %v752 = vsub.s32 2, %v751
      %v753 = vrot.slane %v740, %v752
      %754 = vrot.lane.b32.xlu0 %v745, 48
      %v755 = vpop.permute.xlu0 %754
      %756 = vrot.lane.b32.xlu0 %v749, 48
      %v757 = vpop.permute.xlu0 %756
      %758 = vrot.lane.b32.xlu0 %v753, 48
      %v759 = vpop.permute.xlu0 %758
      %vm760 = vcmask 392192
      %v761 = vsel %vm760, %v755, %v757
      %v762 = vsel %vm760, %v757, %v759
      %v767 = vmul.f32 %v619, %v755
      %v768 = vmul.f32 %v620, %v761
      %v769 = vmul.f32 %v621, %v762
      %v770 = vmul.f32 %v622, %v759
      %v771 = vmul.f32 %v623, %v755
      %v772 = vmul.f32 %v624, %v761
      %v773 = vmul.f32 %v625, %v762
      %v774 = vmul.f32 %v626, %v759
      %783 = vrot.lane.b32.xlu0 %v767, 80
      %v784 = vpop.permute.xlu0 %783
      %785 = vrot.lane.b32.xlu0 %v768, 80
      %v786 = vpop.permute.xlu0 %785
      %787 = vrot.lane.b32.xlu0 %v769, 80
      %v788 = vpop.permute.xlu0 %787
      %789 = vrot.lane.b32.xlu0 %v770, 80
      %v790 = vpop.permute.xlu0 %789
      %791 = vrot.lane.b32.xlu0 %v771, 80
      %v792 = vpop.permute.xlu0 %791
      %793 = vrot.lane.b32.xlu0 %v772, 80
      %v794 = vpop.permute.xlu0 %793
      %795 = vrot.lane.b32.xlu0 %v773, 80
      %v796 = vpop.permute.xlu0 %795
      %797 = vrot.lane.b32.xlu0 %v774, 80
      %v798 = vpop.permute.xlu0 %797
      %vm799 = vcmask 654336
      %v800 = vsel %vm799, %v784, %v786
      %v801 = vsel %vm799, %v786, %v788
      %v802 = vsel %vm799, %v788, %v790
      %v803 = vsel %vm799, %v792, %v794
      %v804 = vsel %vm799, %v794, %v796
      %v805 = vsel %vm799, %v796, %v798
      %v812 = vadd.f32 %v733, %v800
      %v813 = vadd.f32 %v734, %v801
      %v814 = vadd.f32 %v735, %v802
      %v815 = vadd.f32 %v736, %v803
      %v816 = vadd.f32 %v737, %v804
      %v817 = vadd.f32 %v738, %v805
      %s818 = scalar_lea.vmem %s3, 12
      %v819 = vld [vmem:[%s818] ss:$4 sm:$0x7]
      %v821 = vlaneseq
      %v822 = vshrl.u32 %v821, 7
      %v823 = vsub.s32 0, %v822
      %v824 = vrot.slane %v819, %v823
      %v825 = vlaneseq
      %v826 = vshrl.u32 %v825, 7
      %v827 = vsub.s32 1, %v826
      %v828 = vrot.slane %v819, %v827
      %v829 = vlaneseq
      %v830 = vshrl.u32 %v829, 7
      %v831 = vsub.s32 2, %v830
      %v832 = vrot.slane %v819, %v831
      %v836 = vmul.f32 %v619, %v824
      %v837 = vmul.f32 %v620, %v828
      %v838 = vmul.f32 %v621, %v832
      %v839 = vmul.f32 %v623, %v824
      %v840 = vmul.f32 %v624, %v828
      %v841 = vmul.f32 %v625, %v832
      %v842 = vmul.f32 %v627, %v824
      %v843 = vmul.f32 %v628, %v828
      %v844 = vmul.f32 %v629, %v832
      %vm854 = vcmask 1046528
      %v855 = vrot.slane %v836, 1
      %v856 = vrot.slane %v839, 1
      %v857 = vsel %vm854, %v855, %v856
      %v858 = vrot.slane %v837, 1
      %v859 = vrot.slane %v840, 1
      %v860 = vsel %vm854, %v858, %v859
      %v861 = vrot.slane %v838, 1
      %v862 = vrot.slane %v841, 1
      %v863 = vsel %vm854, %v861, %v862
      %v864 = vrot.slane %v842, 1
      %v865 = vsel %vm854, %v856, %v864
      %v866 = vrot.slane %v843, 1
      %v867 = vsel %vm854, %v859, %v866
      %v868 = vrot.slane %v844, 1
      %v869 = vsel %vm854, %v862, %v868
      %v876 = vadd.f32 %v812, %v857
      %v877 = vadd.f32 %v813, %v860
      %v878 = vadd.f32 %v814, %v863
      %v879 = vadd.f32 %v815, %v865
      %v880 = vadd.f32 %v816, %v867
      %v881 = vadd.f32 %v817, %v869
      %s882 = scalar_lea.vmem %s818, 1
      %v883 = vld [vmem:[%s882] ss:$4 sm:$0x7]
      %v885 = vlaneseq
      %v886 = vshrl.u32 %v885, 7
      %v887 = vsub.s32 0, %v886
      %v888 = vrot.slane %v883, %v887
      %v889 = vlaneseq
      %v890 = vshrl.u32 %v889, 7
      %v891 = vsub.s32 1, %v890
      %v892 = vrot.slane %v883, %v891
      %v893 = vlaneseq
      %v894 = vshrl.u32 %v893, 7
      %v895 = vsub.s32 2, %v894
      %v896 = vrot.slane %v883, %v895
      %897 = vrot.lane.b32.xlu0 %v888, 24
      %v898 = vpop.permute.xlu0 %897
      %899 = vrot.lane.b32.xlu0 %v892, 24
      %v900 = vpop.permute.xlu0 %899
      %901 = vrot.lane.b32.xlu0 %v896, 24
      %v902 = vpop.permute.xlu0 %901
      %v903 = vsel %vm681, %v898, %v900
      %v904 = vsel %vm681, %v900, %v902
      %v909 = vmul.f32 %v619, %v898
      %v910 = vmul.f32 %v620, %v903
      %v911 = vmul.f32 %v621, %v904
      %v912 = vmul.f32 %v622, %v902
      %v913 = vmul.f32 %v623, %v898
      %v914 = vmul.f32 %v624, %v903
      %v915 = vmul.f32 %v625, %v904
      %v916 = vmul.f32 %v626, %v902
      %v917 = vmul.f32 %v627, %v898
      %v918 = vmul.f32 %v628, %v903
      %v919 = vmul.f32 %v629, %v904
      %v920 = vmul.f32 %v630, %v902
      %v933 = vrot.slane %v909, 1
      %v934 = vrot.slane %v913, 1
      %v935 = vsel %vm854, %v933, %v934
      %v936 = vrot.slane %v910, 1
      %v937 = vrot.slane %v914, 1
      %v938 = vsel %vm854, %v936, %v937
      %v939 = vrot.slane %v911, 1
      %v940 = vrot.slane %v915, 1
      %v941 = vsel %vm854, %v939, %v940
      %v942 = vrot.slane %v912, 1
      %v943 = vrot.slane %v916, 1
      %v944 = vsel %vm854, %v942, %v943
      %v945 = vrot.slane %v917, 1
      %v946 = vsel %vm854, %v934, %v945
      %v947 = vrot.slane %v918, 1
      %v948 = vsel %vm854, %v937, %v947
      %v949 = vrot.slane %v919, 1
      %v950 = vsel %vm854, %v940, %v949
      %v951 = vrot.slane %v920, 1
      %v952 = vsel %vm854, %v943, %v951
      %953 = vrot.lane.b32.xlu0 %v935, 104
      %v954 = vpop.permute.xlu0 %953
      %955 = vrot.lane.b32.xlu0 %v938, 104
      %v956 = vpop.permute.xlu0 %955
      %957 = vrot.lane.b32.xlu0 %v941, 104
      %v958 = vpop.permute.xlu0 %957
      %959 = vrot.lane.b32.xlu0 %v944, 104
      %v960 = vpop.permute.xlu0 %959
      %961 = vrot.lane.b32.xlu0 %v946, 104
      %v962 = vpop.permute.xlu0 %961
      %963 = vrot.lane.b32.xlu0 %v948, 104
      %v964 = vpop.permute.xlu0 %963
      %965 = vrot.lane.b32.xlu0 %v950, 104
      %v966 = vpop.permute.xlu0 %965
      %967 = vrot.lane.b32.xlu0 %v952, 104
      %v968 = vpop.permute.xlu0 %967
      %v969 = vsel %vm720, %v954, %v956
      %v970 = vsel %vm720, %v956, %v958
      %v971 = vsel %vm720, %v958, %v960
      %v972 = vsel %vm720, %v962, %v964
      %v973 = vsel %vm720, %v964, %v966
      %v974 = vsel %vm720, %v966, %v968
      %v981 = vadd.f32 %v876, %v969
      %v982 = vadd.f32 %v877, %v970
      %v983 = vadd.f32 %v878, %v971
      %v984 = vadd.f32 %v879, %v972
      %v985 = vadd.f32 %v880, %v973
      %v986 = vadd.f32 %v881, %v974
      %s987 = scalar_lea.vmem %s818, 2
      %v988 = vld [vmem:[%s987] ss:$4 sm:$0x7]
      %v990 = vlaneseq
      %v991 = vshrl.u32 %v990, 7
      %v992 = vsub.s32 0, %v991
      %v993 = vrot.slane %v988, %v992
      %v994 = vlaneseq
      %v995 = vshrl.u32 %v994, 7
      %v996 = vsub.s32 1, %v995
      %v997 = vrot.slane %v988, %v996
      %v998 = vlaneseq
      %v999 = vshrl.u32 %v998, 7
      %v1000 = vsub.s32 2, %v999
      %v1001 = vrot.slane %v988, %v1000
      %1002 = vrot.lane.b32.xlu0 %v993, 48
      %v1003 = vpop.permute.xlu0 %1002
      %1004 = vrot.lane.b32.xlu0 %v997, 48
      %v1005 = vpop.permute.xlu0 %1004
      %1006 = vrot.lane.b32.xlu0 %v1001, 48
      %v1007 = vpop.permute.xlu0 %1006
      %v1008 = vsel %vm760, %v1003, %v1005
      %v1009 = vsel %vm760, %v1005, %v1007
      %v1014 = vmul.f32 %v619, %v1003
      %v1015 = vmul.f32 %v620, %v1008
      %v1016 = vmul.f32 %v621, %v1009
      %v1017 = vmul.f32 %v622, %v1007
      %v1018 = vmul.f32 %v623, %v1003
      %v1019 = vmul.f32 %v624, %v1008
      %v1020 = vmul.f32 %v625, %v1009
      %v1021 = vmul.f32 %v626, %v1007
      %v1022 = vmul.f32 %v627, %v1003
      %v1023 = vmul.f32 %v628, %v1008
      %v1024 = vmul.f32 %v629, %v1009
      %v1025 = vmul.f32 %v630, %v1007
      %v1038 = vrot.slane %v1014, 1
      %v1039 = vrot.slane %v1018, 1
      %v1040 = vsel %vm854, %v1038, %v1039
      %v1041 = vrot.slane %v1015, 1
      %v1042 = vrot.slane %v1019, 1
      %v1043 = vsel %vm854, %v1041, %v1042
      %v1044 = vrot.slane %v1016, 1
      %v1045 = vrot.slane %v1020, 1
      %v1046 = vsel %vm854, %v1044, %v1045
      %v1047 = vrot.slane %v1017, 1
      %v1048 = vrot.slane %v1021, 1
      %v1049 = vsel %vm854, %v1047, %v1048
      %v1050 = vrot.slane %v1022, 1
      %v1051 = vsel %vm854, %v1039, %v1050
      %v1052 = vrot.slane %v1023, 1
      %v1053 = vsel %vm854, %v1042, %v1052
      %v1054 = vrot.slane %v1024, 1
      %v1055 = vsel %vm854, %v1045, %v1054
      %v1056 = vrot.slane %v1025, 1
      %v1057 = vsel %vm854, %v1048, %v1056
      %1058 = vrot.lane.b32.xlu0 %v1040, 80
      %v1059 = vpop.permute.xlu0 %1058
      %1060 = vrot.lane.b32.xlu0 %v1043, 80
      %v1061 = vpop.permute.xlu0 %1060
      %1062 = vrot.lane.b32.xlu0 %v1046, 80
      %v1063 = vpop.permute.xlu0 %1062
      %1064 = vrot.lane.b32.xlu0 %v1049, 80
      %v1065 = vpop.permute.xlu0 %1064
      %1066 = vrot.lane.b32.xlu0 %v1051, 80
      %v1067 = vpop.permute.xlu0 %1066
      %1068 = vrot.lane.b32.xlu0 %v1053, 80
      %v1069 = vpop.permute.xlu0 %1068
      %1070 = vrot.lane.b32.xlu0 %v1055, 80
      %v1071 = vpop.permute.xlu0 %1070
      %1072 = vrot.lane.b32.xlu0 %v1057, 80
      %v1073 = vpop.permute.xlu0 %1072
      %v1074 = vsel %vm799, %v1059, %v1061
      %v1075 = vsel %vm799, %v1061, %v1063
      %v1076 = vsel %vm799, %v1063, %v1065
      %v1077 = vsel %vm799, %v1067, %v1069
      %v1078 = vsel %vm799, %v1069, %v1071
      %v1079 = vsel %vm799, %v1071, %v1073
      %v1086 = vadd.f32 %v981, %v1074
      %v1087 = vadd.f32 %v982, %v1075
      %v1088 = vadd.f32 %v983, %v1076
      %v1089 = vadd.f32 %v984, %v1077
      %v1090 = vadd.f32 %v985, %v1078
      %v1091 = vadd.f32 %v986, %v1079
      %s1092 = scalar_lea.vmem %s3, 24
      %v1093 = vld [vmem:[%s1092] ss:$4 sm:$0x7]
      %v1095 = vlaneseq
      %v1096 = vshrl.u32 %v1095, 7
      %v1097 = vsub.s32 0, %v1096
      %v1098 = vrot.slane %v1093, %v1097
      %v1099 = vlaneseq
      %v1100 = vshrl.u32 %v1099, 7
      %v1101 = vsub.s32 1, %v1100
      %v1102 = vrot.slane %v1093, %v1101
      %v1103 = vlaneseq
      %v1104 = vshrl.u32 %v1103, 7
      %v1105 = vsub.s32 2, %v1104
      %v1106 = vrot.slane %v1093, %v1105
      %v1110 = vmul.f32 %v619, %v1098
      %v1111 = vmul.f32 %v620, %v1102
      %v1112 = vmul.f32 %v621, %v1106
      %v1113 = vmul.f32 %v623, %v1098
      %v1114 = vmul.f32 %v624, %v1102
      %v1115 = vmul.f32 %v625, %v1106
      %v1116 = vmul.f32 %v627, %v1098
      %v1117 = vmul.f32 %v628, %v1102
      %v1118 = vmul.f32 %v629, %v1106
      %vm1128 = vcmask 1045504
      %v1129 = vrot.slane %v1110, 2
      %v1130 = vrot.slane %v1113, 2
      %v1131 = vsel %vm1128, %v1129, %v1130
      %v1132 = vrot.slane %v1111, 2
      %v1133 = vrot.slane %v1114, 2
      %v1134 = vsel %vm1128, %v1132, %v1133
      %v1135 = vrot.slane %v1112, 2
      %v1136 = vrot.slane %v1115, 2
      %v1137 = vsel %vm1128, %v1135, %v1136
      %v1138 = vrot.slane %v1116, 2
      %v1139 = vsel %vm1128, %v1130, %v1138
      %v1140 = vrot.slane %v1117, 2
      %v1141 = vsel %vm1128, %v1133, %v1140
      %v1142 = vrot.slane %v1118, 2
      %v1143 = vsel %vm1128, %v1136, %v1142
      %v1150 = vadd.f32 %v1086, %v1131
      %v1151 = vadd.f32 %v1087, %v1134
      %v1152 = vadd.f32 %v1088, %v1137
      %v1153 = vadd.f32 %v1089, %v1139
      %v1154 = vadd.f32 %v1090, %v1141
      %v1155 = vadd.f32 %v1091, %v1143
      %s1156 = scalar_lea.vmem %s1092, 1
      %v1157 = vld [vmem:[%s1156] ss:$4 sm:$0x7]
      %v1159 = vlaneseq
      %v1160 = vshrl.u32 %v1159, 7
      %v1161 = vsub.s32 0, %v1160
      %v1162 = vrot.slane %v1157, %v1161
      %v1163 = vlaneseq
      %v1164 = vshrl.u32 %v1163, 7
      %v1165 = vsub.s32 1, %v1164
      %v1166 = vrot.slane %v1157, %v1165
      %v1167 = vlaneseq
      %v1168 = vshrl.u32 %v1167, 7
      %v1169 = vsub.s32 2, %v1168
      %v1170 = vrot.slane %v1157, %v1169
      %1171 = vrot.lane.b32.xlu0 %v1162, 24
      %v1172 = vpop.permute.xlu0 %1171
      %1173 = vrot.lane.b32.xlu0 %v1166, 24
      %v1174 = vpop.permute.xlu0 %1173
      %1175 = vrot.lane.b32.xlu0 %v1170, 24
      %v1176 = vpop.permute.xlu0 %1175
      %v1177 = vsel %vm681, %v1172, %v1174
      %v1178 = vsel %vm681, %v1174, %v1176
      %v1183 = vmul.f32 %v619, %v1172
      %v1184 = vmul.f32 %v620, %v1177
      %v1185 = vmul.f32 %v621, %v1178
      %v1186 = vmul.f32 %v622, %v1176
      %v1187 = vmul.f32 %v623, %v1172
      %v1188 = vmul.f32 %v624, %v1177
      %v1189 = vmul.f32 %v625, %v1178
      %v1190 = vmul.f32 %v626, %v1176
      %v1191 = vmul.f32 %v627, %v1172
      %v1192 = vmul.f32 %v628, %v1177
      %v1193 = vmul.f32 %v629, %v1178
      %v1194 = vmul.f32 %v630, %v1176
      %v1207 = vrot.slane %v1183, 2
      %v1208 = vrot.slane %v1187, 2
      %v1209 = vsel %vm1128, %v1207, %v1208
      %v1210 = vrot.slane %v1184, 2
      %v1211 = vrot.slane %v1188, 2
      %v1212 = vsel %vm1128, %v1210, %v1211
      %v1213 = vrot.slane %v1185, 2
      %v1214 = vrot.slane %v1189, 2
      %v1215 = vsel %vm1128, %v1213, %v1214
      %v1216 = vrot.slane %v1186, 2
      %v1217 = vrot.slane %v1190, 2
      %v1218 = vsel %vm1128, %v1216, %v1217
      %v1219 = vrot.slane %v1191, 2
      %v1220 = vsel %vm1128, %v1208, %v1219
      %v1221 = vrot.slane %v1192, 2
      %v1222 = vsel %vm1128, %v1211, %v1221
      %v1223 = vrot.slane %v1193, 2
      %v1224 = vsel %vm1128, %v1214, %v1223
      %v1225 = vrot.slane %v1194, 2
      %v1226 = vsel %vm1128, %v1217, %v1225
      %1227 = vrot.lane.b32.xlu0 %v1209, 104
      %v1228 = vpop.permute.xlu0 %1227
      %1229 = vrot.lane.b32.xlu0 %v1212, 104
      %v1230 = vpop.permute.xlu0 %1229
      %1231 = vrot.lane.b32.xlu0 %v1215, 104
      %v1232 = vpop.permute.xlu0 %1231
      %1233 = vrot.lane.b32.xlu0 %v1218, 104
      %v1234 = vpop.permute.xlu0 %1233
      %1235 = vrot.lane.b32.xlu0 %v1220, 104
      %v1236 = vpop.permute.xlu0 %1235
      %1237 = vrot.lane.b32.xlu0 %v1222, 104
      %v1238 = vpop.permute.xlu0 %1237
      %1239 = vrot.lane.b32.xlu0 %v1224, 104
      %v1240 = vpop.permute.xlu0 %1239
      %1241 = vrot.lane.b32.xlu0 %v1226, 104
      %v1242 = vpop.permute.xlu0 %1241
      %v1243 = vsel %vm720, %v1228, %v1230
      %v1244 = vsel %vm720, %v1230, %v1232
      %v1245 = vsel %vm720, %v1232, %v1234
      %v1246 = vsel %vm720, %v1236, %v1238
      %v1247 = vsel %vm720, %v1238, %v1240
      %v1248 = vsel %vm720, %v1240, %v1242
      %v1255 = vadd.f32 %v1150, %v1243
      %v1256 = vadd.f32 %v1151, %v1244
      %v1257 = vadd.f32 %v1152, %v1245
      %v1258 = vadd.f32 %v1153, %v1246
      %v1259 = vadd.f32 %v1154, %v1247
      %v1260 = vadd.f32 %v1155, %v1248
      %s1261 = scalar_lea.vmem %s1092, 2
      %v1262 = vld [vmem:[%s1261] ss:$4 sm:$0x7]
      %v1264 = vlaneseq
      %v1265 = vshrl.u32 %v1264, 7
      %v1266 = vsub.s32 0, %v1265
      %v1267 = vrot.slane %v1262, %v1266
      %v1268 = vlaneseq
      %v1269 = vshrl.u32 %v1268, 7
      %v1270 = vsub.s32 1, %v1269
      %v1271 = vrot.slane %v1262, %v1270
      %v1272 = vlaneseq
      %v1273 = vshrl.u32 %v1272, 7
      %v1274 = vsub.s32 2, %v1273
      %v1275 = vrot.slane %v1262, %v1274
      %1276 = vrot.lane.b32.xlu0 %v1267, 48
      %v1277 = vpop.permute.xlu0 %1276
      %1278 = vrot.lane.b32.xlu0 %v1271, 48
      %v1279 = vpop.permute.xlu0 %1278
      %1280 = vrot.lane.b32.xlu0 %v1275, 48
      %v1281 = vpop.permute.xlu0 %1280
      %v1282 = vsel %vm760, %v1277, %v1279
      %v1283 = vsel %vm760, %v1279, %v1281
      %v1288 = vmul.f32 %v619, %v1277
      %v1289 = vmul.f32 %v620, %v1282
      %v1290 = vmul.f32 %v621, %v1283
      %v1291 = vmul.f32 %v622, %v1281
      %v1292 = vmul.f32 %v623, %v1277
      %v1293 = vmul.f32 %v624, %v1282
      %v1294 = vmul.f32 %v625, %v1283
      %v1295 = vmul.f32 %v626, %v1281
      %v1296 = vmul.f32 %v627, %v1277
      %v1297 = vmul.f32 %v628, %v1282
      %v1298 = vmul.f32 %v629, %v1283
      %v1299 = vmul.f32 %v630, %v1281
      %v1312 = vrot.slane %v1288, 2
      %v1313 = vrot.slane %v1292, 2
      %v1314 = vsel %vm1128, %v1312, %v1313
      %v1315 = vrot.slane %v1289, 2
      %v1316 = vrot.slane %v1293, 2
      %v1317 = vsel %vm1128, %v1315, %v1316
      %v1318 = vrot.slane %v1290, 2
      %v1319 = vrot.slane %v1294, 2
      %v1320 = vsel %vm1128, %v1318, %v1319
      %v1321 = vrot.slane %v1291, 2
      %v1322 = vrot.slane %v1295, 2
      %v1323 = vsel %vm1128, %v1321, %v1322
      %v1324 = vrot.slane %v1296, 2
      %v1325 = vsel %vm1128, %v1313, %v1324
      %v1326 = vrot.slane %v1297, 2
      %v1327 = vsel %vm1128, %v1316, %v1326
      %v1328 = vrot.slane %v1298, 2
      %v1329 = vsel %vm1128, %v1319, %v1328
      %v1330 = vrot.slane %v1299, 2
      %v1331 = vsel %vm1128, %v1322, %v1330
      %1332 = vrot.lane.b32.xlu0 %v1314, 80
      %v1333 = vpop.permute.xlu0 %1332
      %1334 = vrot.lane.b32.xlu0 %v1317, 80
      %v1335 = vpop.permute.xlu0 %1334
      %1336 = vrot.lane.b32.xlu0 %v1320, 80
      %v1337 = vpop.permute.xlu0 %1336
      %1338 = vrot.lane.b32.xlu0 %v1323, 80
      %v1339 = vpop.permute.xlu0 %1338
      %1340 = vrot.lane.b32.xlu0 %v1325, 80
      %v1341 = vpop.permute.xlu0 %1340
      %1342 = vrot.lane.b32.xlu0 %v1327, 80
      %v1343 = vpop.permute.xlu0 %1342
      %1344 = vrot.lane.b32.xlu0 %v1329, 80
      %v1345 = vpop.permute.xlu0 %1344
      %1346 = vrot.lane.b32.xlu0 %v1331, 80
      %v1347 = vpop.permute.xlu0 %1346
      %v1348 = vsel %vm799, %v1333, %v1335
      %v1349 = vsel %vm799, %v1335, %v1337
      %v1350 = vsel %vm799, %v1337, %v1339
      %v1351 = vsel %vm799, %v1341, %v1343
      %v1352 = vsel %vm799, %v1343, %v1345
      %v1353 = vsel %vm799, %v1345, %v1347
      %v1360 = vadd.f32 %v1255, %v1348
      %v1361 = vadd.f32 %v1256, %v1349
      %v1362 = vadd.f32 %v1257, %v1350
      %v1363 = vadd.f32 %v1258, %v1351
      %v1364 = vadd.f32 %v1259, %v1352
      %v1365 = vadd.f32 %v1260, %v1353
      %v1366 = vld [vmem:[%s4] sm:$0x7]
      %v1368 = vlaneseq
      %v1369 = vshrl.u32 %v1368, 7
      %v1370 = vsub.s32 0, %v1369
      %v1371 = vrot.slane %v1366, %v1370
      %v1372 = vlaneseq
      %v1373 = vshrl.u32 %v1372, 7
      %v1374 = vsub.s32 1, %v1373
      %v1375 = vrot.slane %v1366, %v1374
      %v1376 = vlaneseq
      %v1377 = vshrl.u32 %v1376, 7
      %v1378 = vsub.s32 2, %v1377
      %v1379 = vrot.slane %v1366, %v1378
      %v1383 = vadd.f32 %v1360, %v1371
      %v1384 = vadd.f32 %v1361, %v1375
      %v1385 = vadd.f32 %v1362, %v1379
      %v1386 = vadd.f32 %v1363, %v1371
      %v1387 = vadd.f32 %v1364, %v1375
      %v1388 = vadd.f32 %v1365, %v1379
      %v1389 = vmax.f32 %v1383, 0.0
      %v1390 = vmax.f32 %v1384, 0.0
      %v1391 = vmax.f32 %v1385, 0.0
      %v1392 = vmax.f32 %v1386, 0.0
      %v1393 = vmax.f32 %v1387, 0.0
      %v1394 = vmax.f32 %v1388, 0.0
      %v1395 = vld [vmem:[%s5] sm:$0xff]
      %v1396 = vld [vmem:[%s5 + $0x8] sm:$0xff]
      %v1397 = vld [vmem:[%s5 + $0x10] sm:$0xff]
      %v1398 = vld [vmem:[%s5 + $0x18] sm:$0xff]
      %v1399 = vld [vmem:[%s5 + $0x20] sm:$0xff]
      %v1400 = vld [vmem:[%s5 + $0x28] sm:$0xff]
      %v1401 = vld [vmem:[%s5 + $0x30] sm:$0xff]
      %v1402 = vld [vmem:[%s5 + $0x38] sm:$0xff]
      %v1403 = vld [vmem:[%s5 + $0x40] sm:$0xff]
      %v1404 = vld [vmem:[%s5 + $0x48] sm:$0xff]
      %v1405 = vld [vmem:[%s5 + $0x50] sm:$0xff]
      %v1406 = vld [vmem:[%s5 + $0x58] sm:$0xff]
      %v1407 = vld [vmem:[%s5 + $0x60] sm:$0xff]
      %v1408 = vld [vmem:[%s5 + $0x68] sm:$0xff]
      %v1409 = vld [vmem:[%s5 + $0x70] sm:$0xff]
      %v1410 = vld [vmem:[%s5 + $0x78] sm:$0xff]
      %v1411 = vld [vmem:[%s5 + $0x80] sm:$0xff]
      %v1412 = vld [vmem:[%s5 + $0x88] sm:$0xff]
      %v1413 = vld [vmem:[%s5 + $0x90] sm:$0xff]
      %v1414 = vld [vmem:[%s5 + $0x98] sm:$0xff]
      %v1415 = vld [vmem:[%s5 + $0xa0] sm:$0xff]
      %v1416 = vld [vmem:[%s5 + $0xa8] sm:$0xff]
      %v1417 = vld [vmem:[%s5 + $0xb0] sm:$0xff]
      %v1418 = vld [vmem:[%s5 + $0xb8] sm:$0xff]
      %v1419 = vld [vmem:[%s5 + $0xc0] sm:$0xff]
      %v1420 = vld [vmem:[%s5 + $0xc8] sm:$0xff]
      %v1421 = vld [vmem:[%s5 + $0xd0] sm:$0xff]
      %v1422 = vld [vmem:[%s5 + $0xd8] sm:$0xff]
      %v1423 = vld [vmem:[%s5 + $0xe0] sm:$0xff]
      %v1424 = vld [vmem:[%s5 + $0xe8] sm:$0xff]
      %v1425 = vld [vmem:[%s5 + $0xf0] sm:$0xff]
      %v1426 = vld [vmem:[%s5 + $0xf8] sm:$0xff]
      %v1427 = vld [vmem:[%s5 + $0x100] sm:$0xff]
      %v1428 = vld [vmem:[%s5 + $0x108] sm:$0xff]
      %v1429 = vld [vmem:[%s5 + $0x110] sm:$0xff]
      %v1430 = vld [vmem:[%s5 + $0x118] sm:$0xff]
      %v1431 = vld [vmem:[%s5 + $0x120] sm:$0xff]
      %v1432 = vld [vmem:[%s5 + $0x128] sm:$0xff]
      %v1433 = vld [vmem:[%s5 + $0x130] sm:$0xff]
      %v1434 = vld [vmem:[%s5 + $0x138] sm:$0xff]
      %v1435 = vld [vmem:[%s5 + $0x140] sm:$0xff]
      %v1436 = vld [vmem:[%s5 + $0x148] sm:$0xff]
      %v1437 = vld [vmem:[%s5 + $0x150] sm:$0xff]
      %v1438 = vld [vmem:[%s5 + $0x158] sm:$0xff]
      %v1439 = vld [vmem:[%s5 + $0x160] sm:$0xff]
      %v1440 = vld [vmem:[%s5 + $0x168] sm:$0xff]
      %v1441 = vld [vmem:[%s5 + $0x170] sm:$0xff]
      %v1442 = vld [vmem:[%s5 + $0x178] sm:$0xff]
      %v1443 = vld [vmem:[%s6] sm:$0x1]
      %v1445 = vlaneseq
      %v1446 = vshrl.u32 %v1445, 7
      %v1447 = vsub.s32 0, %v1446
      %v1448 = vrot.slane %v1443, %v1447
      %1450 = vmatprep.subr.mxu0 0.0
      %1451 = vmatpush1.msra.mxu0 %v1395
      %1452 = vmatprep.subr.mxu0 0.0
      %1453 = vmatpush1.msra.mxu0 %v1396
      %1454 = vmatprep.subr.mxu0 0.0
      %1455 = vmatpush1.msra.mxu0 %v1397
      %1456 = vmatprep.subr.mxu0 0.0
      %1457 = vmatpush1.msra.mxu0 %v1398
      %1458 = vmatprep.subr.mxu0 0.0
      %1459 = vmatpush1.msra.mxu0 %v1399
      %1460 = vmatprep.subr.mxu0 0.0
      %1461 = vmatpush1.msra.mxu0 %v1400
      %1462 = vmatprep.subr.mxu0 0.0
      %1463 = vmatpush1.msra.mxu0 %v1401
      %1464 = vmatprep.subr.mxu0 0.0
      %1465 = vmatpush1.msra.mxu0 %v1402
      %1466 = vmatprep.subr.mxu0 0.0
      %1467 = vmatpush1.msra.mxu0 %v1403
      %1468 = vmatprep.subr.mxu0 0.0
      %1469 = vmatpush1.msra.mxu0 %v1404
      %1470 = vmatprep.subr.mxu0 0.0
      %1471 = vmatpush1.msra.mxu0 %v1405
      %1472 = vmatprep.subr.mxu0 0.0
      %1473 = vmatpush1.msra.mxu0 %v1406
      %1474 = vmatprep.subr.mxu0 0.0
      %1475 = vmatpush1.msra.mxu0 %v1407
      %1476 = vmatprep.subr.mxu0 0.0
      %1477 = vmatpush1.msra.mxu0 %v1408
      %1478 = vmatprep.subr.mxu0 0.0
      %1479 = vmatpush1.msra.mxu0 %v1409
      %1480 = vmatprep.subr.mxu0 0.0
      %1481 = vmatpush1.msra.mxu0 %v1410
      %1482 = vmatprep.subr.mxu0 0.0
      %1483 = vmatpush1.msra.mxu0 %v1411
      %1484 = vmatprep.subr.mxu0 0.0
      %1485 = vmatpush1.msra.mxu0 %v1412
      %1486 = vmatprep.subr.mxu0 0.0
      %1487 = vmatpush1.msra.mxu0 %v1413
      %1488 = vmatprep.subr.mxu0 0.0
      %1489 = vmatpush1.msra.mxu0 %v1414
      %1490 = vmatprep.subr.mxu0 0.0
      %1491 = vmatpush1.msra.mxu0 %v1415
      %1492 = vmatprep.subr.mxu0 0.0
      %1493 = vmatpush1.msra.mxu0 %v1416
      %1494 = vmatprep.subr.mxu0 0.0
      %1495 = vmatpush1.msra.mxu0 %v1417
      %1496 = vmatprep.subr.mxu0 0.0
      %1497 = vmatpush1.msra.mxu0 %v1418
      %1498 = vmatprep.subr.mxu0 0.0
      %1499 = vmatpush1.msra.mxu0 %v1419
      %1500 = vmatprep.subr.mxu0 0.0
      %1501 = vmatpush1.msra.mxu0 %v1420
      %1502 = vmatprep.subr.mxu0 0.0
      %1503 = vmatpush1.msra.mxu0 %v1421
      %1504 = vmatprep.subr.mxu0 0.0
      %1505 = vmatpush1.msra.mxu0 %v1422
      %1506 = vmatprep.subr.mxu0 0.0
      %1507 = vmatpush1.msra.mxu0 %v1423
      %1508 = vmatprep.subr.mxu0 0.0
      %1509 = vmatpush1.msra.mxu0 %v1424
      %1510 = vmatprep.subr.mxu0 0.0
      %1511 = vmatpush1.msra.mxu0 %v1425
      %1512 = vmatprep.subr.mxu0 0.0
      %1513 = vmatpush1.msra.mxu0 %v1426
      %1514 = vmatprep.mubr.f32.mxu0 %v1390
      %1515 = vmatmul.mubr.f32.gmra.mrb[0].mxu0 %v1389
      %v1516 = vpop.f32.mrb[0].mxu0
      %v1517 = vadd.f32 %v1448, %v1516
      %v1518 = vpop.f32.mrb[0].mxu0
      %1519 = vmatprep.mubr.f32.mxu0 %v1393
      %1520 = vmatmul.mubr.f32.gmra.mrb[0].mxu0 %v1392
      %v1521 = vpop.f32.mrb[0].mxu0
      %v1522 = vadd.f32 %v1448, %v1521
      %v1523 = vpop.f32.mrb[0].mxu0
      %1524 = vdwg.mxu0
      %1525 = vmatprep.subr.mxu0 0.0
      %1526 = vmatpush1.msra.mxu0 %v1427
      %1527 = vmatprep.subr.mxu0 0.0
      %1528 = vmatpush1.msra.mxu0 %v1428
      %1529 = vmatprep.subr.mxu0 0.0
      %1530 = vmatpush1.msra.mxu0 %v1429
      %1531 = vmatprep.subr.mxu0 0.0
      %1532 = vmatpush1.msra.mxu0 %v1430
      %1533 = vmatprep.subr.mxu0 0.0
      %1534 = vmatpush1.msra.mxu0 %v1431
      %1535 = vmatprep.subr.mxu0 0.0
      %1536 = vmatpush1.msra.mxu0 %v1432
      %1537 = vmatprep.subr.mxu0 0.0
      %1538 = vmatpush1.msra.mxu0 %v1433
      %1539 = vmatprep.subr.mxu0 0.0
      %1540 = vmatpush1.msra.mxu0 %v1434
      %1541 = vmatprep.subr.mxu0 0.0
      %1542 = vmatpush1.msra.mxu0 %v1435
      %1543 = vmatprep.subr.mxu0 0.0
      %1544 = vmatpush1.msra.mxu0 %v1436
      %1545 = vmatprep.subr.mxu0 0.0
      %1546 = vmatpush1.msra.mxu0 %v1437
      %1547 = vmatprep.subr.mxu0 0.0
      %1548 = vmatpush1.msra.mxu0 %v1438
      %1549 = vmatprep.subr.mxu0 0.0
      %1550 = vmatpush1.msra.mxu0 %v1439
      %1551 = vmatprep.subr.mxu0 0.0
      %1552 = vmatpush1.msra.mxu0 %v1440
      %1553 = vmatprep.subr.mxu0 0.0
      %1554 = vmatpush1.msra.mxu0 %v1441
      %1555 = vmatprep.subr.mxu0 0.0
      %1556 = vmatpush1.msra.mxu0 %v1442
      %1557 = vmatprep.subr.mxu0 0.0
      %1558 = vmatpush1.msra.mxu0 0.0
      %1559 = vmatprep.subr.mxu0 0.0
      %1560 = vmatpush1.msra.mxu0 0.0
      %1561 = vmatprep.subr.mxu0 0.0
      %1562 = vmatpush1.msra.mxu0 0.0
      %1563 = vmatprep.subr.mxu0 0.0
      %1564 = vmatpush1.msra.mxu0 0.0
      %1565 = vmatprep.subr.mxu0 0.0
      %1566 = vmatpush1.msra.mxu0 0.0
      %1567 = vmatprep.subr.mxu0 0.0
      %1568 = vmatpush1.msra.mxu0 0.0
      %1569 = vmatprep.subr.mxu0 0.0
      %1570 = vmatpush1.msra.mxu0 0.0
      %1571 = vmatprep.subr.mxu0 0.0
      %1572 = vmatpush1.msra.mxu0 0.0
      %1573 = vmatprep.subr.mxu0 0.0
      %1574 = vmatpush1.msra.mxu0 0.0
      %1575 = vmatprep.subr.mxu0 0.0
      %1576 = vmatpush1.msra.mxu0 0.0
      %1577 = vmatprep.subr.mxu0 0.0
      %1578 = vmatpush1.msra.mxu0 0.0
      %1579 = vmatprep.subr.mxu0 0.0
      %1580 = vmatpush1.msra.mxu0 0.0
      %1581 = vmatprep.subr.mxu0 0.0
      %1582 = vmatpush1.msra.mxu0 0.0
      %1583 = vmatprep.subr.mxu0 0.0
      %1584 = vmatpush1.msra.mxu0 0.0
      %1585 = vmatprep.subr.mxu0 0.0
      %1586 = vmatpush1.msra.mxu0 0.0
      %1587 = vmatprep.subr.mxu0 0.0
      %1588 = vmatpush1.msra.mxu0 0.0
      %1589 = vmatprep.mubr.f32.mxu0 0.0
      %1590 = vmatmul.mubr.f32.gmra.mrb[0].mxu0 %v1391
      %v1591 = vpop.f32.mrb[0].mxu0
      %v1592 = vadd.f32 %v1517, %v1591
      %v1593 = vpop.f32.mrb[0].mxu0
      %1594 = vmatprep.mubr.f32.mxu0 0.0
      %1595 = vmatmul.mubr.f32.gmra.mrb[0].mxu0 %v1394
      %v1596 = vpop.f32.mrb[0].mxu0
      %v1597 = vadd.f32 %v1522, %v1596
      %v1598 = vpop.f32.mrb[0].mxu0
      %1599 = vdwg.mxu0
      %v1603 = vrot.slane %v308, 1
      %v1604 = vrot.slane %v310, 1
      %v1605 = vsel %vm854, %v1603, %v1604
      %v1606 = vrot.slane %v309, 1
      %v1607 = vrot.slane %v311, 1
      %v1608 = vsel %vm854, %v1606, %v1607
      %v1609 = vrot.slane %v312, 1
      %v1610 = vsel %vm854, %v1604, %v1609
      %v1611 = vrot.slane %v313, 1
      %v1612 = vsel %vm854, %v1607, %v1611
      %1613 = vrot.lane.b32.xlu0 %v1605, 120
      %v1614 = vpop.permute.xlu0 %1613
      %1615 = vrot.lane.b32.xlu0 %v1608, 120
      %v1616 = vpop.permute.xlu0 %1615
      %1617 = vrot.lane.b32.xlu0 %v1610, 120
      %v1618 = vpop.permute.xlu0 %1617
      %1619 = vrot.lane.b32.xlu0 %v1612, 120
      %v1620 = vpop.permute.xlu0 %1619
      %vm1621 = vcmask 982016
      %v1622 = vsel %vm1621, %v1614, %v1616
      %v1623 = vsel %vm1621, %v1618, %v1620
      %v1626 = vadd.f32 %v1592, %v1622
      %v1627 = vadd.f32 %v1597, %v1623
      %1628 = vst [vmem:[%s300] sm:$0xff] %v1626
      %1629 = vst [vmem:[%s300 + $0x8] sm:$0xff] %v1627
      %s1630 = smul.u32 2, %s23
      %p1631 = scmp.lt.s32.totalorder %s22, 1
      %s1632 = scalar_select %p1631, %s22, 1
      %p1633 = scmp.lt.s32.totalorder %s1630, 1
      %s1634 = scalar_select %p1633, %s1630, 1
      %s1635 = smul.addr %s1632, 2
      %s1636 = sadd.s32 %s1634, %s1635
      %s1637 = smul.addr %s1636, 8
      %s1638 = scalar_lea.vmem %s7, %s1637
      // Predicated region
      $region49: #{inverted_residual_pallas.1} parent=47 // pred_check
        %p1639 = pneg %p202
      $region50: #{inverted_residual_pallas.1} parent=47 // pred_check_branch
        %1641 = sbr.rel (%p1639) target = $region52
      $region51: #{inverted_residual_pallas.1} parent=47 // pred_region
        %s1642 = smul.u32 2, %s23
      $region52: #{inverted_residual_pallas.1} parent=47 // pred_fallthru
        _
    $region48: #{inverted_residual_pallas.1} parent=5 // pred_fallthru
      _
    %p1643 = scmp.le.s32.totalorder 2, %s13
    // Predicated region
    $region53: #{inverted_residual_pallas.1} parent=5 // pred_check
      %p1644 = pneg %p1643
    $region54: #{inverted_residual_pallas.1} parent=5 // pred_check_branch
      %1646 = sbr.rel (%p1644) target = $region56
    $region55: #{inverted_residual_pallas.1} parent=5 // pred_region
      %s1647 = ssub.s32 %s13, 2
      // Predicated region
      $region57: #{inverted_residual_pallas.1} parent=55 // pred_check
        %p1648 = pneg %p208
      $region58: #{inverted_residual_pallas.1} parent=55 // pred_check_branch
        %1650 = sbr.rel (%p1648) target = $region60
      $region59: #{inverted_residual_pallas.1} parent=55 // pred_region
        %s1651 = smul.u32 2, %s25
        %p1652 = scmp.lt.s32.totalorder %s24, 1
        %s1653 = scalar_select %p1652, %s24, 1
        %p1654 = scmp.lt.s32.totalorder %s1651, 1
        %s1655 = scalar_select %p1654, %s1651, 1
        %s1656 = smul.addr %s1653, 2
        %s1657 = sadd.s32 %s1655, %s1656
        %s1658 = smul.addr %s1657, 8
        %s1659 = scalar_lea.vmem %s7, %s1658
      $region60: #{inverted_residual_pallas.1} parent=55 // pred_fallthru
        _
    $region56: #{inverted_residual_pallas.1} parent=5 // pred_fallthru
      _
  $region6: #{inverted_residual_pallas.1} parent=0 // loop_footer
    %s17 = sadd.s32 1, %s13
  $region7: #{inverted_residual_pallas.1} parent=0 // loop_footer_branch
    %12 = sbr.rel target = $region3
  $region8: #{inverted_residual_pallas.1} parent=0 // loop_exit
    _

</llo_original>
